<compile_context>
chip_gen: v7x
topology: tpu7x:2x2x1
jax: 0.10.0
libtpu: 0.0.40
codegen_flags: <defaults>
</compile_context>

<pallas_src>
import numpy as np
import jax
import jax.numpy as jnp
from jax import lax
from jax.experimental import pallas as pl
from jax.experimental.pallas import tpu as pltpu

# ---- model config (small, consistent with NAO's constructor args) ----
B = 2                # batch  (callers should batch candidates for real throughput)
ENC_VOCAB = 12       # encoder_vocab_size
DEC_VOCAB = 12       # decoder_vocab_size
EMB = 32             # encoder_emb_size
HID = 32             # encoder_hidden_size == decoder_hidden_size
MLP_HID = 32         # mlp_hidden_size (mlp_layers = 2)
SRC_LEN = 8          # source_length == encoder_length
DEC_LEN = 8          # decoder_length
V_PAD = 128          # lane-padded output-projection width


# ---------------- fused encoder + decoder kernel ----------------

def nao_kernel(enc_tok_ref, dec_tok_ref, attn_bias_ref, perm_ref,
               emb_ref, rnn_w_ref, rnn_b_ref, mlp_w_ref, mlp_b_ref,
               reg_ref, att_ref, out_w_ref, out_b_ref,
               pv_ref, logp_ref, sym_ref,
               enc_pre_ref, enc_out_ref, dec_pre_ref, h_scr_ref, mix_scr_ref):
    f32 = jnp.float32
    Bk = pv_ref.shape[0]
    H = h_scr_ref.shape[1]
    TsB = enc_pre_ref.shape[0]          # Ts * B (time-major flat rows: r = t*B + b)
    TdB = dec_pre_ref.shape[0]          # Td * B
    Ts = TsB // Bk
    Td = TdB // Bk
    Venc = emb_ref.shape[1]
    Vout = logp_ref.shape[2]
    VPAD = out_w_ref.shape[1]
    MH = mlp_w_ref.shape[2]

    # ---- weights (loaded once) ----
    enc_wih = rnn_w_ref[0]              # (E, 4H)   (= torch weight_ih_l0.T)
    enc_whh = rnn_w_ref[1]              # (H, 4H)
    dec_wih = rnn_w_ref[2]
    dec_whh = rnn_w_ref[3]
    enc_b = rnn_b_ref[0:1, :]           # (1, 4H)   (= b_ih + b_hh)
    dec_b = rnn_b_ref[1:2, :]

    # ---- in-kernel embedding lookup fused with the LSTM input projection ----
    # embed(tok) @ W_ih == onehot(tok) @ (table @ W_ih)  (exact: one-hot selects a row).
    # Done for ALL timesteps at once -> only h @ W_hh remains on the serial path.
    enc_oh = (enc_tok_ref[...] ==
              lax.broadcasted_iota(jnp.int32, (TsB, Venc), 1)).astype(f32)
    m_enc = jnp.dot(emb_ref[0], enc_wih, preferred_element_type=f32)       # (V, 4H)
    enc_pre_ref[...] = jnp.dot(enc_oh, m_enc, preferred_element_type=f32) + enc_b

    dec_oh = (dec_tok_ref[...] ==
              lax.broadcasted_iota(jnp.int32, (TdB, Venc), 1)).astype(f32)
    m_dec = jnp.dot(emb_ref[1], dec_wih, preferred_element_type=f32)
    dec_pre_ref[...] = jnp.dot(dec_oh, m_dec, preferred_element_type=f32) + dec_b

    def lstm_cell(gates, c):
        # PyTorch gate order: i, f, g, o
        i = jax.nn.sigmoid(gates[:, 0 * H:1 * H])
        f = jax.nn.sigmoid(gates[:, 1 * H:2 * H])
        g = jnp.tanh(gates[:, 2 * H:3 * H])
        o = jax.nn.sigmoid(gates[:, 3 * H:4 * H])
        c_new = f * c + i * g
        h_new = o * jnp.tanh(c_new)
        return h_new, c_new

    def l2norm(x):
        # F.normalize(x, 2, -1): x / max(||x||, 1e-12) == x * rsqrt(max(||x||^2, 1e-24))
        return x * lax.rsqrt(jnp.maximum(jnp.sum(x * x, axis=-1, keepdims=True), 1e-24))

    # ---- encoder recurrence (normalize + time-mean fused into the loop) ----
    def enc_body(t, carry):
        h, c, s = carry
        r = pl.multiple_of(t * Bk, Bk)
        gates = enc_pre_ref[pl.ds(r, Bk), :] + jnp.dot(
            h, enc_whh, preferred_element_type=f32)
        h, c = lstm_cell(gates, c)
        hn = l2norm(h)                          # normalized output; recurrence keeps raw h
        enc_out_ref[pl.ds(r, Bk), :] = hn
        return (h, c, s + hn)

    zeros_bh = jnp.zeros((Bk, H), f32)
    _, _, hn_sum = lax.fori_loop(0, Ts, enc_body, (zeros_bh, zeros_bh, zeros_bh))

    # ---- arch embedding + predicted-value head ----
    arch = l2norm(hn_sum * (1.0 / Ts))                                     # (B, H)
    x = jnp.maximum(jnp.dot(arch, mlp_w_ref[0], preferred_element_type=f32)
                    + mlp_b_ref[0:1, :], 0.0)
    x = jnp.maximum(jnp.dot(x, mlp_w_ref[1], preferred_element_type=f32)
                    + mlp_b_ref[1:2, :], 0.0)
    v = jnp.dot(x, reg_ref[0:MH, :], preferred_element_type=f32) + reg_ref[MH:MH + 1, :]
    pv_ref[...] = jax.nn.sigmoid(v)                                        # (B, 1)

    # ---- attention context (fixed across decoder steps) ----
    ctx = enc_out_ref[...]                       # (Ts*B, H), rows ordered r = t*B + b
    ctx_t = ctx.T                                # (H, Ts*B)
    att_bias = attn_bias_ref[...]                # (B, Ts*B): 0 for own-batch slots, -1e9 otherwise

    # ---- decoder recurrence: LSTM step + attention only (output head hoisted) ----
    def dec_body(t, carry):
        h, c = carry
        r = pl.multiple_of(t * Bk, Bk)
        gates = dec_pre_ref[pl.ds(r, Bk), :] + jnp.dot(
            h, dec_whh, preferred_element_type=f32)
        h, c = lstm_cell(gates, c)
        # masked dot-product attention over all (t, b) encoder slots via plain MXU matmuls
        scores = jnp.dot(h, ctx_t, preferred_element_type=f32) + att_bias  # (B, Ts*B)
        m = jnp.max(scores, axis=-1, keepdims=True)
        e = jnp.exp(scores - m)                  # masked slots underflow to exactly 0
        attn = e * pl.reciprocal(jnp.sum(e, axis=-1, keepdims=True), approx=True)
        mix = jnp.dot(attn, ctx, preferred_element_type=f32)               # (B, H)
        h_scr_ref[pl.ds(r, Bk), :] = h
        mix_scr_ref[pl.ds(r, Bk), :] = mix
        return (h, c)

    lax.fori_loop(0, Td, dec_body, (arch, arch))      # decoder h0 = c0 = arch_emb

    # ---- output head, once over all Td*B rows ----
    h_all = h_scr_ref[...]                       # (Td*B, H), time-major rows
    mix_all = mix_scr_ref[...]
    w_am = att_ref[0:H, :]                       # linear_out weight, mix part
    w_ah = att_ref[H:2 * H, :]                   # linear_out weight, hidden part
    b_a = att_ref[2 * H:2 * H + 1, :]
    out_t = jnp.tanh(jnp.dot(mix_all, w_am, preferred_element_type=f32)
                     + jnp.dot(h_all, w_ah, preferred_element_type=f32) + b_a)

    # reorder rows time-major -> batch-major with a one-hot permutation matmul
    # (avoids strided / relayout ops; the MXU does the reorder).
    out_bm = jnp.dot(perm_ref[...], out_t, preferred_element_type=f32)     # (B*Td, H)

    # lane-padded output projection; padded lanes carry -1e9 bias so they are inert
    logits = jnp.dot(out_bm, out_w_ref[...], preferred_element_type=f32) + out_b_ref[...]
    lm = jnp.max(logits, axis=-1, keepdims=True)
    lse = lm + jnp.log(jnp.sum(jnp.exp(logits - lm), axis=-1, keepdims=True))
    logp = logits - lse                                                    # (B*Td, VPAD)

    # topk(1)[1] == argmax (first occurrence on ties); padded lanes never win
    col = lax.broadcasted_iota(jnp.int32, (TdB, VPAD), 1)
    idx = jnp.min(jnp.where(logits >= lm, col, VPAD), axis=-1, keepdims=True)

    for b in range(Bk):                          # static python loop; batch-major stores
        logp_ref[b] = logp[b * Td:(b + 1) * Td, :Vout]                     # (Td, V)
        sym_ref[b] = idx[b * Td:(b + 1) * Td, :]                           # (Td, 1)


# ---------------- JAX wrapper ----------------

_VMEM = pl.BlockSpec(memory_space=pltpu.MemorySpace.VMEM)


def nao_forward(params, input_tokens, target_tokens):
    """Returns (predict_value (B,1), decoder_outputs (B,L,V), arch (B,L,1))."""
    Bn, Ts = input_tokens.shape
    Td = target_tokens.shape[1]
    H = params["rnn_w"].shape[2] // 4
    V = DEC_VOCAB

    # token ids, flattened time-major (row = t*B + b); tiny int32 glue only
    enc_tok = jnp.transpose(input_tokens).reshape(Ts * Bn, 1).astype(jnp.int32)
    dec_tok = jnp.transpose(target_tokens).reshape(Td * Bn, 1).astype(jnp.int32)

    # trace-time constants: additive attention mask (own-batch slots = 0, others = -1e9)
    # and the time-major -> batch-major row permutation used by the hoisted output head.
    attn_bias = np.full((Bn, Ts * Bn), -1e9, np.float32)
    for b in range(Bn):
        attn_bias[b, b::Bn] = 0.0
    perm = np.zeros((Td * Bn, Td * Bn), np.float32)
    for b in range(Bn):
        for t in range(Td):
            perm[b * Td + t, t * Bn + b] = 1.0

    pv, logp, sym = pl.pallas_call(
        nao_kernel,
        out_shape=(
            jax.ShapeDtypeStruct((Bn, 1), jnp.float32),        # predict_value
            jax.ShapeDtypeStruct((Bn, Td, V), jnp.float32),    # decoder log-probs
            jax.ShapeDtypeStruct((Bn, Td, 1), jnp.int32),      # arch symbols (argmax)
        ),
        in_specs=[_VMEM] * 13,
        out_specs=(_VMEM, _VMEM, _VMEM),
        scratch_shapes=[
            pltpu.VMEM((Ts * Bn, 4 * H), jnp.float32),   # encoder pre-gates (x @ W_ih + b)
            pltpu.VMEM((Ts * Bn, H), jnp.float32),       # normalized encoder outputs
            pltpu.VMEM((Td * Bn, 4 * H), jnp.float32),   # decoder pre-gates
            pltpu.VMEM((Td * Bn, H), jnp.float32),       # decoder h_t
            pltpu.VMEM((Td * Bn, H), jnp.float32),       # attention mix_t
        ],
    )(enc_tok, dec_tok, attn_bias, perm,
      params["emb"], params["rnn_w"], params["rnn_b"],
      params["mlp_w"], params["mlp_b"], params["reg"], params["att"],
      params["out_w"], params["out_b"])

    return pv, logp, sym


# ---------------- parameter construction ----------------

def init_params(key):
    ks = jax.random.split(key, 19)

    def u(k, shape, scale=0.1):
        return scale * jax.random.uniform(k, shape, jnp.float32, -1.0, 1.0)

    return {
        # encoder
        "enc_embedding": u(ks[0], (ENC_VOCAB, EMB)),
        "enc_w_ih": u(ks[1], (EMB, 4 * HID)),        # weight_ih_l0.T
        "enc_w_hh": u(ks[2], (HID, 4 * HID)),        # weight_hh_l0.T
        "enc_b": u(ks[3], (1, 4 * HID)),             # b_ih + b_hh combined
        "mlp_w1": u(ks[4], (HID, MLP_HID)),
        "mlp_b1": u(ks[5], (1, MLP_HID)),
        "mlp_w2": u(ks[6], (MLP_HID, MLP_HID)),
        "mlp_b2": u(ks[7], (1, MLP_HID)),
        "reg_w": u(ks[8], (MLP_HID, 1)),
        "reg_b": u(ks[9], (1, 1)),
        # decoder
        "dec_embedding": u(ks[10], (DEC_VOCAB, HID)),
        "dec_w_ih": u(ks[11], (HID, 4 * HID)),
        "dec_w_hh": u(ks[12], (HID, 4 * HID)),
        "dec_b": u(ks[13], (1, 4 * HID)),
        "att_w_mix": u(ks[14], (HID, HID)),          # linear_out.weight.T[:H]
        "att_w_h": u(ks[15], (HID, HID)),            # linear_out.weight.T[H:]
        "att_b": u(ks[16], (1, HID)),
        "out_w": u(ks[17], (HID, DEC_VOCAB)),
        "out_b": u(ks[18], (1, DEC_VOCAB)),
    }


def pack_params(p, v_pad=V_PAD):
    """Stack / pad the tiny per-layer weights into a few arrays (fewer input DMAs).

    NOTE: stacking the two embedding tables / LSTM weights assumes
    encoder_emb_size == hidden_size and equal vocab sizes (true for this config).
    """
    out_w = p["out_w"]
    V = out_w.shape[1]
    out_w_pad = jnp.concatenate(
        [out_w, jnp.zeros((out_w.shape[0], v_pad - V), jnp.float32)], axis=1)
    out_b_pad = jnp.concatenate(
        [p["out_b"], jnp.full((1, v_pad - V), -1e9, jnp.float32)], axis=1)
    return {
        "emb": jnp.stack([p["enc_embedding"], p["dec_embedding"]], axis=0),
        "rnn_w": jnp.stack([p["enc_w_ih"], p["enc_w_hh"],
                            p["dec_w_ih"], p["dec_w_hh"]], axis=0),
        "rnn_b": jnp.concatenate([p["enc_b"], p["dec_b"]], axis=0),
        "mlp_w": jnp.stack([p["mlp_w1"], p["mlp_w2"]], axis=0),
        "mlp_b": jnp.concatenate([p["mlp_b1"], p["mlp_b2"]], axis=0),
        "reg": jnp.concatenate([p["reg_w"], p["reg_b"]], axis=0),
        "att": jnp.concatenate([p["att_w_mix"], p["att_w_h"], p["att_b"]], axis=0),
        "out_w": out_w_pad,
        "out_b": out_b_pad,
    }


if __name__ == "__main__":
    key = jax.random.PRNGKey(0)
    pkey, ikey, tkey = jax.random.split(key, 3)
    params = pack_params(init_params(pkey))

    input_tokens = jax.random.randint(ikey, (B, SRC_LEN), 0, ENC_VOCAB, dtype=jnp.int32)
    target_tokens = jax.random.randint(tkey, (B, DEC_LEN), 0, DEC_VOCAB, dtype=jnp.int32)

    fwd = jax.jit(nao_forward)
    predict_value, decoder_outputs, arch = fwd(params, input_tokens, target_tokens)
    jax.block_until_ready((predict_value, decoder_outputs, arch))

    assert predict_value.shape == (B, 1)
    assert decoder_outputs.shape == (B, DEC_LEN, DEC_VOCAB)
    assert arch.shape == (B, DEC_LEN, 1)
    # sanity: finite log-softmax rows that sum to 1 in prob space, in-vocab symbols,
    # sigmoid-bounded predicted value.
    assert bool(jnp.all(jnp.isfinite(decoder_outputs)))
    prob_sum = jnp.sum(jnp.exp(decoder_outputs), axis=-1)
    assert bool(jnp.all(jnp.abs(prob_sum - 1.0) < 1e-3))
    assert bool(jnp.all((arch >= 0) & (arch < DEC_VOCAB)))
    assert bool(jnp.all((predict_value >= 0.0) & (predict_value <= 1.0)))
    print("KERNEL_OK")
</pallas_src>

<mosaic_0001>
module attributes {stable_mosaic.version = 11 : i64} {
  func.func @nao_kernel(%arg0: memref<16x1xi32, #tpu.memory_space<vmem>>, %arg1: memref<16x1xi32, #tpu.memory_space<vmem>>, %arg2: memref<2x16xf32, #tpu.memory_space<vmem>>, %arg3: memref<16x16xf32, #tpu.memory_space<vmem>>, %arg4: memref<2x12x32xf32, #tpu.memory_space<vmem>>, %arg5: memref<4x32x128xf32, #tpu.memory_space<vmem>>, %arg6: memref<2x128xf32, #tpu.memory_space<vmem>>, %arg7: memref<2x32x32xf32, #tpu.memory_space<vmem>>, %arg8: memref<2x32xf32, #tpu.memory_space<vmem>>, %arg9: memref<33x1xf32, #tpu.memory_space<vmem>>, %arg10: memref<65x32xf32, #tpu.memory_space<vmem>>, %arg11: memref<32x128xf32, #tpu.memory_space<vmem>>, %arg12: memref<1x128xf32, #tpu.memory_space<vmem>>, %arg13: memref<2x1xf32, #tpu.memory_space<vmem>>, %arg14: memref<2x8x12xf32, #tpu.memory_space<vmem>>, %arg15: memref<2x8x1xi32, #tpu.memory_space<vmem>>, %arg16: memref<16x128xf32, #tpu.memory_space<vmem>>, %arg17: memref<16x32xf32, #tpu.memory_space<vmem>>, %arg18: memref<16x128xf32, #tpu.memory_space<vmem>>, %arg19: memref<16x32xf32, #tpu.memory_space<vmem>>, %arg20: memref<16x32xf32, #tpu.memory_space<vmem>>) attributes {dimension_semantics = [], scalar_prefetch = 0 : i64, scratch_operands = 5 : i64, tpu.core_type = #tpu.core_type<tc>} {
    %c0 = arith.constant 0 : index
    %c0_0 = arith.constant 0 : index
    %c0_1 = arith.constant 0 : index
    %0 = vector.load %arg5[%c0, %c0_0, %c0_1] : memref<4x32x128xf32, #tpu.memory_space<vmem>>, vector<1x32x128xf32>
    %1 = vector.shape_cast %0 : vector<1x32x128xf32> to vector<32x128xf32>
    %c1 = arith.constant 1 : index
    %c0_2 = arith.constant 0 : index
    %c0_3 = arith.constant 0 : index
    %2 = vector.load %arg5[%c1, %c0_2, %c0_3] : memref<4x32x128xf32, #tpu.memory_space<vmem>>, vector<1x32x128xf32>
    %3 = vector.shape_cast %2 : vector<1x32x128xf32> to vector<32x128xf32>
    %c2 = arith.constant 2 : index
    %c0_4 = arith.constant 0 : index
    %c0_5 = arith.constant 0 : index
    %4 = vector.load %arg5[%c2, %c0_4, %c0_5] : memref<4x32x128xf32, #tpu.memory_space<vmem>>, vector<1x32x128xf32>
    %5 = vector.shape_cast %4 : vector<1x32x128xf32> to vector<32x128xf32>
    %c3 = arith.constant 3 : index
    %c0_6 = arith.constant 0 : index
    %c0_7 = arith.constant 0 : index
    %6 = vector.load %arg5[%c3, %c0_6, %c0_7] : memref<4x32x128xf32, #tpu.memory_space<vmem>>, vector<1x32x128xf32>
    %7 = vector.shape_cast %6 : vector<1x32x128xf32> to vector<32x128xf32>
    %c0_8 = arith.constant 0 : index
    %c0_9 = arith.constant 0 : index
    %8 = vector.load %arg6[%c0_8, %c0_9] : memref<2x128xf32, #tpu.memory_space<vmem>>, vector<1x128xf32>
    %c1_10 = arith.constant 1 : index
    %c0_11 = arith.constant 0 : index
    %9 = vector.load %arg6[%c1_10, %c0_11] : memref<2x128xf32, #tpu.memory_space<vmem>>, vector<1x128xf32>
    %c0_12 = arith.constant 0 : index
    %c0_13 = arith.constant 0 : index
    %10 = vector.load %arg0[%c0_12, %c0_13] : memref<16x1xi32, #tpu.memory_space<vmem>>, vector<16x1xi32>
    %11 = tpu.iota {dimensions = array<i32: 1>} : vector<16x12xi32>
    %12 = vector.broadcast %10 : vector<16x1xi32> to vector<16x12xi32>
    %13 = arith.cmpi eq, %12, %11 : vector<16x12xi32>
    %14 = arith.extui %13 : vector<16x12xi1> to vector<16x12xi32>
    %15 = arith.sitofp %14 : vector<16x12xi32> to vector<16x12xf32>
    %c0_14 = arith.constant 0 : index
    %c0_15 = arith.constant 0 : index
    %c0_16 = arith.constant 0 : index
    %16 = vector.load %arg4[%c0_14, %c0_15, %c0_16] : memref<2x12x32xf32, #tpu.memory_space<vmem>>, vector<1x12x32xf32>
    %17 = vector.shape_cast %16 : vector<1x12x32xf32> to vector<12x32xf32>
    %cst = arith.constant dense<0.000000e+00> : vector<12x128xf32>
    %18 = tpu.matmul %17, %1, %cst {dimension_numbers = #tpu.dot_dimension_numbers<[1], [0], [0], [1], [0, 0, 1, 1], [], []>} : vector<12x32xf32>, vector<32x128xf32>, vector<12x128xf32> -> vector<12x128xf32>
    %cst_17 = arith.constant dense<0.000000e+00> : vector<16x128xf32>
    %19 = tpu.matmul %15, %18, %cst_17 {dimension_numbers = #tpu.dot_dimension_numbers<[1], [0], [0], [1], [0, 0, 1, 1], [], []>} : vector<16x12xf32>, vector<12x128xf32>, vector<16x128xf32> -> vector<16x128xf32>
    %20 = vector.broadcast %8 : vector<1x128xf32> to vector<16x128xf32>
    %21 = arith.addf %19, %20 : vector<16x128xf32>
    %c0_18 = arith.constant 0 : index
    %c0_19 = arith.constant 0 : index
    %22 = vector.load %arg16[%c0_18, %c0_19] : memref<16x128xf32, #tpu.memory_space<vmem>>, vector<16x128xf32>
    tpu.vector_store %arg16[%c0_18, %c0_19], %21 {strides = array<i32>} : memref<16x128xf32, #tpu.memory_space<vmem>>, vector<16x128xf32>,
    %c0_20 = arith.constant 0 : index
    %c0_21 = arith.constant 0 : index
    %23 = vector.load %arg1[%c0_20, %c0_21] : memref<16x1xi32, #tpu.memory_space<vmem>>, vector<16x1xi32>
    %24 = tpu.iota {dimensions = array<i32: 1>} : vector<16x12xi32>
    %25 = vector.broadcast %23 : vector<16x1xi32> to vector<16x12xi32>
    %26 = arith.cmpi eq, %25, %24 : vector<16x12xi32>
    %27 = arith.extui %26 : vector<16x12xi1> to vector<16x12xi32>
    %28 = arith.sitofp %27 : vector<16x12xi32> to vector<16x12xf32>
    %c1_22 = arith.constant 1 : index
    %c0_23 = arith.constant 0 : index
    %c0_24 = arith.constant 0 : index
    %29 = vector.load %arg4[%c1_22, %c0_23, %c0_24] : memref<2x12x32xf32, #tpu.memory_space<vmem>>, vector<1x12x32xf32>
    %30 = vector.shape_cast %29 : vector<1x12x32xf32> to vector<12x32xf32>
    %cst_25 = arith.constant dense<0.000000e+00> : vector<12x128xf32>
    %31 = tpu.matmul %30, %5, %cst_25 {dimension_numbers = #tpu.dot_dimension_numbers<[1], [0], [0], [1], [0, 0, 1, 1], [], []>} : vector<12x32xf32>, vector<32x128xf32>, vector<12x128xf32> -> vector<12x128xf32>
    %cst_26 = arith.constant dense<0.000000e+00> : vector<16x128xf32>
    %32 = tpu.matmul %28, %31, %cst_26 {dimension_numbers = #tpu.dot_dimension_numbers<[1], [0], [0], [1], [0, 0, 1, 1], [], []>} : vector<16x12xf32>, vector<12x128xf32>, vector<16x128xf32> -> vector<16x128xf32>
    %33 = vector.broadcast %9 : vector<1x128xf32> to vector<16x128xf32>
    %34 = arith.addf %32, %33 : vector<16x128xf32>
    %c0_27 = arith.constant 0 : index
    %c0_28 = arith.constant 0 : index
    %35 = vector.load %arg18[%c0_27, %c0_28] : memref<16x128xf32, #tpu.memory_space<vmem>>, vector<16x128xf32>
    tpu.vector_store %arg18[%c0_27, %c0_28], %34 {strides = array<i32>} : memref<16x128xf32, #tpu.memory_space<vmem>>, vector<16x128xf32>,
    %cst_29 = arith.constant 0.000000e+00 : f32
    %36 = vector.broadcast %cst_29 : f32 to vector<2x32xf32>
    %c0_i32 = arith.constant 0 : i32
    %c8_i32 = arith.constant 8 : i32
    %37 = arith.addi %c0_i32, %c8_i32 : i32
    %c1_i32 = arith.constant 1 : i32
    %38:3 = scf.for %arg21 = %c0_i32 to %37 step %c1_i32 iter_args(%arg22 = %36, %arg23 = %36, %arg24 = %36) -> (vector<2x32xf32>, vector<2x32xf32>, vector<2x32xf32>)  : i32 {
      %c2_i32 = arith.constant 2 : i32
      %133 = arith.muli %arg21, %c2_i32 : i32
      %134 = tpu.assume_multiple %133, 2 : i32
      %135 = arith.index_cast %134 : i32 to index
      %c0_97 = arith.constant 0 : index
      %136 = vector.load %arg16[%135, %c0_97] : memref<16x128xf32, #tpu.memory_space<vmem>>, vector<2x128xf32>
      %cst_98 = arith.constant dense<0.000000e+00> : vector<2x128xf32>
      %137 = tpu.matmul %arg22, %3, %cst_98 {dimension_numbers = #tpu.dot_dimension_numbers<[1], [0], [0], [1], [0, 0, 1, 1], [], []>} : vector<2x32xf32>, vector<32x128xf32>, vector<2x128xf32> -> vector<2x128xf32>
      %138 = arith.addf %136, %137 : vector<2x128xf32>
      %139 = vector.extract_strided_slice %138 {offsets = [0, 0], sizes = [2, 32], strides = [1, 1]} : vector<2x128xf32> to vector<2x32xf32>
      %140 = arith.negf %139 : vector<2x32xf32>
      %141 = math.exp %140 : vector<2x32xf32>
      %cst_99 = arith.constant 1.000000e+00 : f32
      %142 = vector.broadcast %cst_99 : f32 to vector<2x32xf32>
      %143 = arith.addf %142, %141 : vector<2x32xf32>
      %144 = arith.divf %142, %143 : vector<2x32xf32>
      %145 = vector.extract_strided_slice %138 {offsets = [0, 32], sizes = [2, 32], strides = [1, 1]} : vector<2x128xf32> to vector<2x32xf32>
      %146 = arith.negf %145 : vector<2x32xf32>
      %147 = math.exp %146 : vector<2x32xf32>
      %cst_100 = arith.constant 1.000000e+00 : f32
      %148 = vector.broadcast %cst_100 : f32 to vector<2x32xf32>
      %149 = arith.addf %148, %147 : vector<2x32xf32>
      %150 = arith.divf %148, %149 : vector<2x32xf32>
      %151 = vector.extract_strided_slice %138 {offsets = [0, 64], sizes = [2, 32], strides = [1, 1]} : vector<2x128xf32> to vector<2x32xf32>
      %152 = math.tanh %151 : vector<2x32xf32>
      %153 = vector.extract_strided_slice %138 {offsets = [0, 96], sizes = [2, 32], strides = [1, 1]} : vector<2x128xf32> to vector<2x32xf32>
      %154 = arith.negf %153 : vector<2x32xf32>
      %155 = math.exp %154 : vector<2x32xf32>
      %cst_101 = arith.constant 1.000000e+00 : f32
      %156 = vector.broadcast %cst_101 : f32 to vector<2x32xf32>
      %157 = arith.addf %156, %155 : vector<2x32xf32>
      %158 = arith.divf %156, %157 : vector<2x32xf32>
      %159 = arith.mulf %150, %arg23 : vector<2x32xf32>
      %160 = arith.mulf %144, %152 : vector<2x32xf32>
      %161 = arith.addf %159, %160 : vector<2x32xf32>
      %162 = math.tanh %161 : vector<2x32xf32>
      %163 = arith.mulf %158, %162 : vector<2x32xf32>
      %164 = arith.mulf %163, %163 : vector<2x32xf32>
      %cst_102 = arith.constant dense<0.000000e+00> : vector<2xf32>
      %165 = vector.multi_reduction <add>, %164, %cst_102 [1] : vector<2x32xf32> to vector<2xf32>
      %166 = vector.shape_cast %165 : vector<2xf32> to vector<2x1xf32>
      %cst_103 = arith.constant 1.000000e-24 : f32
      %167 = vector.broadcast %cst_103 : f32 to vector<2x1xf32>
      %168 = arith.maximumf %166, %167 : vector<2x1xf32>
      %169 = math.rsqrt %168 : vector<2x1xf32>
      %170 = vector.broadcast %169 : vector<2x1xf32> to vector<2x32xf32>
      %171 = arith.mulf %163, %170 : vector<2x32xf32>
      %172 = arith.index_cast %134 : i32 to index
      %c0_104 = arith.constant 0 : index
      %173 = vector.load %arg17[%172, %c0_104] : memref<16x32xf32, #tpu.memory_space<vmem>>, vector<2x32xf32>
      tpu.vector_store %arg17[%172, %c0_104], %171 {strides = array<i32>} : memref<16x32xf32, #tpu.memory_space<vmem>>, vector<2x32xf32>,
      %174 = arith.addf %arg24, %171 : vector<2x32xf32>
      scf.yield %163, %161, %174 : vector<2x32xf32>, vector<2x32xf32>, vector<2x32xf32>
    }
    %c8_i32_30 = arith.constant 8 : i32
    %cst_31 = arith.constant 1.250000e-01 : f32
    %39 = vector.broadcast %cst_31 : f32 to vector<2x32xf32>
    %40 = arith.mulf %38#2, %39 : vector<2x32xf32>
    %41 = arith.mulf %40, %40 : vector<2x32xf32>
    %cst_32 = arith.constant dense<0.000000e+00> : vector<2xf32>
    %42 = vector.multi_reduction <add>, %41, %cst_32 [1] : vector<2x32xf32> to vector<2xf32>
    %43 = vector.shape_cast %42 : vector<2xf32> to vector<2x1xf32>
    %cst_33 = arith.constant 1.000000e-24 : f32
    %44 = vector.broadcast %cst_33 : f32 to vector<2x1xf32>
    %45 = arith.maximumf %43, %44 : vector<2x1xf32>
    %46 = math.rsqrt %45 : vector<2x1xf32>
    %47 = vector.broadcast %46 : vector<2x1xf32> to vector<2x32xf32>
    %48 = arith.mulf %40, %47 : vector<2x32xf32>
    %c0_34 = arith.constant 0 : index
    %c0_35 = arith.constant 0 : index
    %c0_36 = arith.constant 0 : index
    %49 = vector.load %arg7[%c0_34, %c0_35, %c0_36] : memref<2x32x32xf32, #tpu.memory_space<vmem>>, vector<1x32x32xf32>
    %50 = vector.shape_cast %49 : vector<1x32x32xf32> to vector<32x32xf32>
    %cst_37 = arith.constant dense<0.000000e+00> : vector<2x32xf32>
    %51 = tpu.matmul %48, %50, %cst_37 {dimension_numbers = #tpu.dot_dimension_numbers<[1], [0], [0], [1], [0, 0, 1, 1], [], []>} : vector<2x32xf32>, vector<32x32xf32>, vector<2x32xf32> -> vector<2x32xf32>
    %c0_38 = arith.constant 0 : index
    %c0_39 = arith.constant 0 : index
    %52 = vector.load %arg8[%c0_38, %c0_39] : memref<2x32xf32, #tpu.memory_space<vmem>>, vector<1x32xf32>
    %53 = vector.broadcast %52 : vector<1x32xf32> to vector<2x32xf32>
    %54 = arith.addf %51, %53 : vector<2x32xf32>
    %cst_40 = arith.constant 0.000000e+00 : f32
    %55 = vector.broadcast %cst_40 : f32 to vector<2x32xf32>
    %56 = arith.maximumf %54, %55 : vector<2x32xf32>
    %c1_41 = arith.constant 1 : index
    %c0_42 = arith.constant 0 : index
    %c0_43 = arith.constant 0 : index
    %57 = vector.load %arg7[%c1_41, %c0_42, %c0_43] : memref<2x32x32xf32, #tpu.memory_space<vmem>>, vector<1x32x32xf32>
    %58 = vector.shape_cast %57 : vector<1x32x32xf32> to vector<32x32xf32>
    %cst_44 = arith.constant dense<0.000000e+00> : vector<2x32xf32>
    %59 = tpu.matmul %56, %58, %cst_44 {dimension_numbers = #tpu.dot_dimension_numbers<[1], [0], [0], [1], [0, 0, 1, 1], [], []>} : vector<2x32xf32>, vector<32x32xf32>, vector<2x32xf32> -> vector<2x32xf32>
    %c1_45 = arith.constant 1 : index
    %c0_46 = arith.constant 0 : index
    %60 = vector.load %arg8[%c1_45, %c0_46] : memref<2x32xf32, #tpu.memory_space<vmem>>, vector<1x32xf32>
    %61 = vector.broadcast %60 : vector<1x32xf32> to vector<2x32xf32>
    %62 = arith.addf %59, %61 : vector<2x32xf32>
    %cst_47 = arith.constant 0.000000e+00 : f32
    %63 = vector.broadcast %cst_47 : f32 to vector<2x32xf32>
    %64 = arith.maximumf %62, %63 : vector<2x32xf32>
    %c0_48 = arith.constant 0 : index
    %c0_49 = arith.constant 0 : index
    %65 = vector.load %arg9[%c0_48, %c0_49] : memref<33x1xf32, #tpu.memory_space<vmem>>, vector<32x1xf32>
    %cst_50 = arith.constant dense<0.000000e+00> : vector<2x1xf32>
    %66 = tpu.matmul %64, %65, %cst_50 {dimension_numbers = #tpu.dot_dimension_numbers<[1], [0], [0], [1], [0, 0, 1, 1], [], []>} : vector<2x32xf32>, vector<32x1xf32>, vector<2x1xf32> -> vector<2x1xf32>
    %c32 = arith.constant 32 : index
    %c0_51 = arith.constant 0 : index
    %67 = vector.load %arg9[%c32, %c0_51] : memref<33x1xf32, #tpu.memory_space<vmem>>, vector<1x1xf32>
    %68 = vector.broadcast %67 : vector<1x1xf32> to vector<2x1xf32>
    %69 = arith.addf %66, %68 : vector<2x1xf32>
    %70 = arith.negf %69 : vector<2x1xf32>
    %71 = math.exp %70 : vector<2x1xf32>
    %cst_52 = arith.constant 1.000000e+00 : f32
    %72 = vector.broadcast %cst_52 : f32 to vector<2x1xf32>
    %73 = arith.addf %72, %71 : vector<2x1xf32>
    %74 = arith.divf %72, %73 : vector<2x1xf32>
    %c0_53 = arith.constant 0 : index
    %c0_54 = arith.constant 0 : index
    %75 = vector.load %arg13[%c0_53, %c0_54] : memref<2x1xf32, #tpu.memory_space<vmem>>, vector<2x1xf32>
    tpu.vector_store %arg13[%c0_53, %c0_54], %74 {strides = array<i32>} : memref<2x1xf32, #tpu.memory_space<vmem>>, vector<2x1xf32>,
    %c0_55 = arith.constant 0 : index
    %c0_56 = arith.constant 0 : index
    %76 = vector.load %arg17[%c0_55, %c0_56] : memref<16x32xf32, #tpu.memory_space<vmem>>, vector<16x32xf32>
    %77 = tpu.transpose %76, [1, 0] : vector<16x32xf32> -> vector<32x16xf32>
    %c0_57 = arith.constant 0 : index
    %c0_58 = arith.constant 0 : index
    %78 = vector.load %arg2[%c0_57, %c0_58] : memref<2x16xf32, #tpu.memory_space<vmem>>, vector<2x16xf32>
    %c0_i32_59 = arith.constant 0 : i32
    %c8_i32_60 = arith.constant 8 : i32
    %79 = arith.addi %c0_i32_59, %c8_i32_60 : i32
    %c1_i32_61 = arith.constant 1 : i32
    %80:2 = scf.for %arg21 = %c0_i32_59 to %79 step %c1_i32_61 iter_args(%arg22 = %48, %arg23 = %48) -> (vector<2x32xf32>, vector<2x32xf32>)  : i32 {
      %c2_i32 = arith.constant 2 : i32
      %133 = arith.muli %arg21, %c2_i32 : i32
      %134 = tpu.assume_multiple %133, 2 : i32
      %135 = arith.index_cast %134 : i32 to index
      %c0_97 = arith.constant 0 : index
      %136 = vector.load %arg18[%135, %c0_97] : memref<16x128xf32, #tpu.memory_space<vmem>>, vector<2x128xf32>
      %cst_98 = arith.constant dense<0.000000e+00> : vector<2x128xf32>
      %137 = tpu.matmul %arg22, %7, %cst_98 {dimension_numbers = #tpu.dot_dimension_numbers<[1], [0], [0], [1], [0, 0, 1, 1], [], []>} : vector<2x32xf32>, vector<32x128xf32>, vector<2x128xf32> -> vector<2x128xf32>
      %138 = arith.addf %136, %137 : vector<2x128xf32>
      %139 = vector.extract_strided_slice %138 {offsets = [0, 0], sizes = [2, 32], strides = [1, 1]} : vector<2x128xf32> to vector<2x32xf32>
      %140 = arith.negf %139 : vector<2x32xf32>
      %141 = math.exp %140 : vector<2x32xf32>
      %cst_99 = arith.constant 1.000000e+00 : f32
      %142 = vector.broadcast %cst_99 : f32 to vector<2x32xf32>
      %143 = arith.addf %142, %141 : vector<2x32xf32>
      %144 = arith.divf %142, %143 : vector<2x32xf32>
      %145 = vector.extract_strided_slice %138 {offsets = [0, 32], sizes = [2, 32], strides = [1, 1]} : vector<2x128xf32> to vector<2x32xf32>
      %146 = arith.negf %145 : vector<2x32xf32>
      %147 = math.exp %146 : vector<2x32xf32>
      %cst_100 = arith.constant 1.000000e+00 : f32
      %148 = vector.broadcast %cst_100 : f32 to vector<2x32xf32>
      %149 = arith.addf %148, %147 : vector<2x32xf32>
      %150 = arith.divf %148, %149 : vector<2x32xf32>
      %151 = vector.extract_strided_slice %138 {offsets = [0, 64], sizes = [2, 32], strides = [1, 1]} : vector<2x128xf32> to vector<2x32xf32>
      %152 = math.tanh %151 : vector<2x32xf32>
      %153 = vector.extract_strided_slice %138 {offsets = [0, 96], sizes = [2, 32], strides = [1, 1]} : vector<2x128xf32> to vector<2x32xf32>
      %154 = arith.negf %153 : vector<2x32xf32>
      %155 = math.exp %154 : vector<2x32xf32>
      %cst_101 = arith.constant 1.000000e+00 : f32
      %156 = vector.broadcast %cst_101 : f32 to vector<2x32xf32>
      %157 = arith.addf %156, %155 : vector<2x32xf32>
      %158 = arith.divf %156, %157 : vector<2x32xf32>
      %159 = arith.mulf %150, %arg23 : vector<2x32xf32>
      %160 = arith.mulf %144, %152 : vector<2x32xf32>
      %161 = arith.addf %159, %160 : vector<2x32xf32>
      %162 = math.tanh %161 : vector<2x32xf32>
      %163 = arith.mulf %158, %162 : vector<2x32xf32>
      %cst_102 = arith.constant dense<0.000000e+00> : vector<2x16xf32>
      %164 = tpu.matmul %163, %77, %cst_102 {dimension_numbers = #tpu.dot_dimension_numbers<[1], [0], [0], [1], [0, 0, 1, 1], [], []>} : vector<2x32xf32>, vector<32x16xf32>, vector<2x16xf32> -> vector<2x16xf32>
      %165 = arith.addf %164, %78 : vector<2x16xf32>
      %cst_103 = arith.constant dense<0xFF800000> : vector<2xf32>
      %166 = vector.multi_reduction <maximumf>, %165, %cst_103 [1] : vector<2x16xf32> to vector<2xf32>
      %167 = vector.shape_cast %166 : vector<2xf32> to vector<2x1xf32>
      %168 = vector.broadcast %167 : vector<2x1xf32> to vector<2x16xf32>
      %169 = arith.subf %165, %168 : vector<2x16xf32>
      %170 = math.exp %169 : vector<2x16xf32>
      %cst_104 = arith.constant dense<0.000000e+00> : vector<2xf32>
      %171 = vector.multi_reduction <add>, %170, %cst_104 [1] : vector<2x16xf32> to vector<2xf32>
      %172 = vector.shape_cast %171 : vector<2xf32> to vector<2x1xf32>
      %173 = tpu.reciprocal %172 {approx = true} : vector<2x1xf32> -> vector<2x1xf32>
      %174 = vector.broadcast %173 : vector<2x1xf32> to vector<2x16xf32>
      %175 = arith.mulf %170, %174 : vector<2x16xf32>
      %cst_105 = arith.constant dense<0.000000e+00> : vector<2x32xf32>
      %176 = tpu.matmul %175, %76, %cst_105 {dimension_numbers = #tpu.dot_dimension_numbers<[1], [0], [0], [1], [0, 0, 1, 1], [], []>} : vector<2x16xf32>, vector<16x32xf32>, vector<2x32xf32> -> vector<2x32xf32>
      %177 = arith.index_cast %134 : i32 to index
      %c0_106 = arith.constant 0 : index
      %178 = vector.load %arg19[%177, %c0_106] : memref<16x32xf32, #tpu.memory_space<vmem>>, vector<2x32xf32>
      tpu.vector_store %arg19[%177, %c0_106], %163 {strides = array<i32>} : memref<16x32xf32, #tpu.memory_space<vmem>>, vector<2x32xf32>,
      %179 = arith.index_cast %134 : i32 to index
      %c0_107 = arith.constant 0 : index
      %180 = vector.load %arg20[%179, %c0_107] : memref<16x32xf32, #tpu.memory_space<vmem>>, vector<2x32xf32>
      tpu.vector_store %arg20[%179, %c0_107], %176 {strides = array<i32>} : memref<16x32xf32, #tpu.memory_space<vmem>>, vector<2x32xf32>,
      scf.yield %163, %161 : vector<2x32xf32>, vector<2x32xf32>
    }
    %c8_i32_62 = arith.constant 8 : i32
    %c0_63 = arith.constant 0 : index
    %c0_64 = arith.constant 0 : index
    %81 = vector.load %arg19[%c0_63, %c0_64] : memref<16x32xf32, #tpu.memory_space<vmem>>, vector<16x32xf32>
    %c0_65 = arith.constant 0 : index
    %c0_66 = arith.constant 0 : index
    %82 = vector.load %arg20[%c0_65, %c0_66] : memref<16x32xf32, #tpu.memory_space<vmem>>, vector<16x32xf32>
    %c0_67 = arith.constant 0 : index
    %c0_68 = arith.constant 0 : index
    %83 = vector.load %arg10[%c0_67, %c0_68] : memref<65x32xf32, #tpu.memory_space<vmem>>, vector<32x32xf32>
    %c32_69 = arith.constant 32 : index
    %c0_70 = arith.constant 0 : index
    %84 = vector.load %arg10[%c32_69, %c0_70] : memref<65x32xf32, #tpu.memory_space<vmem>>, vector<32x32xf32>
    %c64 = arith.constant 64 : index
    %c0_71 = arith.constant 0 : index
    %85 = vector.load %arg10[%c64, %c0_71] : memref<65x32xf32, #tpu.memory_space<vmem>>, vector<1x32xf32>
    %cst_72 = arith.constant dense<0.000000e+00> : vector<16x32xf32>
    %86 = tpu.matmul %82, %83, %cst_72 {dimension_numbers = #tpu.dot_dimension_numbers<[1], [0], [0], [1], [0, 0, 1, 1], [], []>} : vector<16x32xf32>, vector<32x32xf32>, vector<16x32xf32> -> vector<16x32xf32>
    %cst_73 = arith.constant dense<0.000000e+00> : vector<16x32xf32>
    %87 = tpu.matmul %81, %84, %cst_73 {dimension_numbers = #tpu.dot_dimension_numbers<[1], [0], [0], [1], [0, 0, 1, 1], [], []>} : vector<16x32xf32>, vector<32x32xf32>, vector<16x32xf32> -> vector<16x32xf32>
    %88 = arith.addf %86, %87 : vector<16x32xf32>
    %89 = vector.broadcast %85 : vector<1x32xf32> to vector<16x32xf32>
    %90 = arith.addf %88, %89 : vector<16x32xf32>
    %91 = math.tanh %90 : vector<16x32xf32>
    %c0_74 = arith.constant 0 : index
    %c0_75 = arith.constant 0 : index
    %92 = vector.load %arg3[%c0_74, %c0_75] : memref<16x16xf32, #tpu.memory_space<vmem>>, vector<16x16xf32>
    %cst_76 = arith.constant dense<0.000000e+00> : vector<16x32xf32>
    %93 = tpu.matmul %92, %91, %cst_76 {dimension_numbers = #tpu.dot_dimension_numbers<[1], [0], [0], [1], [0, 0, 1, 1], [], []>} : vector<16x16xf32>, vector<16x32xf32>, vector<16x32xf32> -> vector<16x32xf32>
    %c0_77 = arith.constant 0 : index
    %c0_78 = arith.constant 0 : index
    %94 = vector.load %arg11[%c0_77, %c0_78] : memref<32x128xf32, #tpu.memory_space<vmem>>, vector<32x128xf32>
    %cst_79 = arith.constant dense<0.000000e+00> : vector<16x128xf32>
    %95 = tpu.matmul %93, %94, %cst_79 {dimension_numbers = #tpu.dot_dimension_numbers<[1], [0], [0], [1], [0, 0, 1, 1], [], []>} : vector<16x32xf32>, vector<32x128xf32>, vector<16x128xf32> -> vector<16x128xf32>
    %c0_80 = arith.constant 0 : index
    %c0_81 = arith.constant 0 : index
    %96 = vector.load %arg12[%c0_80, %c0_81] : memref<1x128xf32, #tpu.memory_space<vmem>>, vector<1x128xf32>
    %97 = vector.broadcast %96 : vector<1x128xf32> to vector<16x128xf32>
    %98 = arith.addf %95, %97 : vector<16x128xf32>
    %cst_82 = arith.constant dense<0xFF800000> : vector<16xf32>
    %99 = vector.multi_reduction <maximumf>, %98, %cst_82 [1] : vector<16x128xf32> to vector<16xf32>
    %100 = vector.shape_cast %99 : vector<16xf32> to vector<16x1xf32>
    %101 = vector.broadcast %100 : vector<16x1xf32> to vector<16x128xf32>
    %102 = arith.subf %98, %101 : vector<16x128xf32>
    %103 = math.exp %102 : vector<16x128xf32>
    %cst_83 = arith.constant dense<0.000000e+00> : vector<16xf32>
    %104 = vector.multi_reduction <add>, %103, %cst_83 [1] : vector<16x128xf32> to vector<16xf32>
    %105 = vector.shape_cast %104 : vector<16xf32> to vector<16x1xf32>
    %106 = math.log %105 : vector<16x1xf32>
    %107 = arith.addf %100, %106 : vector<16x1xf32>
    %108 = vector.broadcast %107 : vector<16x1xf32> to vector<16x128xf32>
    %109 = arith.subf %98, %108 : vector<16x128xf32>
    %110 = tpu.iota {dimensions = array<i32: 1>} : vector<16x128xi32>
    %111 = vector.broadcast %100 : vector<16x1xf32> to vector<16x128xf32>
    %112 = arith.cmpf oge, %98, %111 : vector<16x128xf32>
    %c128_i32 = arith.constant 128 : i32
    %113 = vector.broadcast %c128_i32 : i32 to vector<16x128xi32>
    %114 = arith.select %112, %110, %113 : vector<16x128xi1>, vector<16x128xi32>
    %cst_84 = arith.constant dense<2147483647> : vector<16xi32>
    %115 = vector.multi_reduction <minsi>, %114, %cst_84 [1] : vector<16x128xi32> to vector<16xi32>
    %116 = vector.shape_cast %115 : vector<16xi32> to vector<16x1xi32>
    %117 = vector.extract_strided_slice %109 {offsets = [0, 0], sizes = [8, 12], strides = [1, 1]} : vector<16x128xf32> to vector<8x12xf32>
    %c0_85 = arith.constant 0 : index
    %c0_86 = arith.constant 0 : index
    %c0_87 = arith.constant 0 : index
    %118 = vector.load %arg14[%c0_85, %c0_86, %c0_87] : memref<2x8x12xf32, #tpu.memory_space<vmem>>, vector<1x8x12xf32>
    %119 = vector.shape_cast %118 : vector<1x8x12xf32> to vector<8x12xf32>
    %120 = vector.shape_cast %117 : vector<8x12xf32> to vector<1x8x12xf32>
    tpu.vector_store %arg14[%c0_85, %c0_86, %c0_87], %120 {strides = array<i32>} : memref<2x8x12xf32, #tpu.memory_space<vmem>>, vector<1x8x12xf32>,
    %121 = vector.extract_strided_slice %116 {offsets = [0, 0], sizes = [8, 1], strides = [1, 1]} : vector<16x1xi32> to vector<8x1xi32>
    %c0_88 = arith.constant 0 : index
    %c0_89 = arith.constant 0 : index
    %c0_90 = arith.constant 0 : index
    %122 = vector.load %arg15[%c0_88, %c0_89, %c0_90] : memref<2x8x1xi32, #tpu.memory_space<vmem>>, vector<1x8x1xi32>
    %123 = vector.shape_cast %122 : vector<1x8x1xi32> to vector<8x1xi32>
    %124 = vector.shape_cast %121 : vector<8x1xi32> to vector<1x8x1xi32>
    tpu.vector_store %arg15[%c0_88, %c0_89, %c0_90], %124 {strides = array<i32>} : memref<2x8x1xi32, #tpu.memory_space<vmem>>, vector<1x8x1xi32>,
    %125 = vector.extract_strided_slice %109 {offsets = [8, 0], sizes = [8, 12], strides = [1, 1]} : vector<16x128xf32> to vector<8x12xf32>
    %c1_91 = arith.constant 1 : index
    %c0_92 = arith.constant 0 : index
    %c0_93 = arith.constant 0 : index
    %126 = vector.load %arg14[%c1_91, %c0_92, %c0_93] : memref<2x8x12xf32, #tpu.memory_space<vmem>>, vector<1x8x12xf32>
    %127 = vector.shape_cast %126 : vector<1x8x12xf32> to vector<8x12xf32>
    %128 = vector.shape_cast %125 : vector<8x12xf32> to vector<1x8x12xf32>
    tpu.vector_store %arg14[%c1_91, %c0_92, %c0_93], %128 {strides = array<i32>} : memref<2x8x12xf32, #tpu.memory_space<vmem>>, vector<1x8x12xf32>,
    %129 = vector.extract_strided_slice %116 {offsets = [8, 0], sizes = [8, 1], strides = [1, 1]} : vector<16x1xi32> to vector<8x1xi32>
    %c1_94 = arith.constant 1 : index
    %c0_95 = arith.constant 0 : index
    %c0_96 = arith.constant 0 : index
    %130 = vector.load %arg15[%c1_94, %c0_95, %c0_96] : memref<2x8x1xi32, #tpu.memory_space<vmem>>, vector<1x8x1xi32>
    %131 = vector.shape_cast %130 : vector<1x8x1xi32> to vector<8x1xi32>
    %132 = vector.shape_cast %129 : vector<8x1xi32> to vector<1x8x1xi32>
    tpu.vector_store %arg15[%c1_94, %c0_95, %c0_96], %132 {strides = array<i32>} : memref<2x8x1xi32, #tpu.memory_space<vmem>>, vector<1x8x1xi32>,
    return
  }
}

</mosaic_0001>

<llo_original>
// kernel: nao_forward.1
$region0: #{nao_forward.1}
  #allocation0 [shape = 'u32[]', space=smem, size = 0x4, offset = 0x4, fixed_abs, tag = 'smem constant byte address 0x4 - core index']
  #allocation1 [shape = 'u32[144,128]{1,0:T(1,128)}', space=vmem, size = 0x12000, scoped, tag = 'internal scratch']
  #allocation2 [shape = 'f32[16,128]{1,0:T(8,128)}', space=vmem, size = 0x2000, scoped, tag = 'scratch operand']
  #allocation3 [shape = 'f32[16,32]{1,0:T(8,128)}', space=vmem, size = 0x2000, scoped, tag = 'scratch operand']
  #allocation4 [shape = 'f32[16,128]{1,0:T(8,128)}', space=vmem, size = 0x2000, scoped, tag = 'scratch operand']
  #allocation5 [shape = 'f32[16,32]{1,0:T(8,128)}', space=vmem, size = 0x2000, scoped, tag = 'scratch operand']
  #allocation6 [shape = 'f32[16,32]{1,0:T(8,128)}', space=vmem, size = 0x2000, scoped, tag = 'scratch operand']
  %s0 = inlined_call_operand.vmem [shape: s32[16,1], index: 0, kind: input, shape index: {}]
  %s1 = inlined_call_operand.vmem [shape: s32[16,1], index: 1, kind: input, shape index: {}]
  %s2 = inlined_call_operand.vmem [shape: f32[2,16], index: 2, kind: input, shape index: {}]
  %s3 = inlined_call_operand.vmem [shape: f32[16,16], index: 3, kind: input, shape index: {}]
  %s4 = inlined_call_operand.vmem [shape: f32[2,12,32], index: 4, kind: input, shape index: {}]
  %s5 = inlined_call_operand.vmem [shape: f32[4,32,128], index: 5, kind: input, shape index: {}]
  %s6 = inlined_call_operand.vmem [shape: f32[2,128], index: 6, kind: input, shape index: {}]
  %s7 = inlined_call_operand.vmem [shape: f32[2,32,32], index: 7, kind: input, shape index: {}]
  %s8 = inlined_call_operand.hbm [shape: f32[2,32], index: 8, kind: input, shape index: {}]
  %s9 = inlined_call_operand.vmem [shape: f32[33,1], index: 9, kind: input, shape index: {}]
  %s10 = inlined_call_operand.vmem [shape: f32[65,32], index: 10, kind: input, shape index: {}]
  %s11 = inlined_call_operand.vmem [shape: f32[32,128], index: 11, kind: input, shape index: {}]
  %s12 = inlined_call_operand.vmem [shape: f32[1,128], index: 12, kind: input, shape index: {}]
  %s13 = inlined_call_operand.vmem [shape: f32[2,1], index: 13, kind: output, shape index: {0}]
  %s14 = inlined_call_operand.hbm [shape: f32[2,8,12], index: 14, kind: output, shape index: {1}]
  %s15 = inlined_call_operand.vmem [shape: s32[2,8,1], index: 15, kind: output, shape index: {2}]
  %16 = xla_tuple %s13, %s14, %s15
  %s17 = sld [smem:[#allocation0]]
  $region96: #{nao_forward.1} parent=0
    _
  %s19 = ssub.s32 1, %s17
  %s20 = scalar_select 0, %s19, %s17
  $region1: #{nao_forward.1} parent=0
    #allocation7 [shape = 'u8[1024]{0}', space=vmem, size = 0x400, scoped, tag = 'input window, operand 8, single buffered']
    #allocation8 [shape = 's32[1]{0}', space=sflag, size = 0x4, scoped, tag = 'scoped memory for nao_forward.1']
    #allocation9 [shape = 's32[1]{0}', space=sflag, size = 0x4, scoped, tag = 'scoped memory for nao_forward.1']
    #allocation10 [shape = 'u8[8192]{0}', space=vmem, size = 0x2000, scoped, tag = 'output window, operand 1, single buffered']
    %21 = vsyncpa [#allocation8], 0
    %22 = vsyncpa [#allocation9], 0
    // Predicated region
    $region2: #{nao_forward.1} parent=1 // pred_check
      _
    $region3: #{nao_forward.1} parent=1 // pred_check_branch
      %24 = sbr.rel (0) target = $region5
    $region4: #{nao_forward.1} parent=1 // pred_region
      _
    $region5: #{nao_forward.1} parent=1 // pred_fallthru
      _
    // Predicated region
    $region6: #{nao_forward.1} parent=1 // pred_check
      _
    $region7: #{nao_forward.1} parent=1 // pred_check_branch
      %26 = sbr.rel (0) target = $region9
    $region8: #{nao_forward.1} parent=1 // pred_region
      _
    $region9: #{nao_forward.1} parent=1 // pred_fallthru
      _
    // Predicated region
    $region10: #{nao_forward.1} parent=1 // pred_check
      _
    $region11: #{nao_forward.1} parent=1 // pred_check_branch
      %28 = sbr.rel (0) target = $region13
    $region12: #{nao_forward.1} parent=1 // pred_region
      _
    $region13: #{nao_forward.1} parent=1 // pred_fallthru
      _
    // Predicated region
    $region14: #{nao_forward.1} parent=1 // pred_check
      _
    $region15: #{nao_forward.1} parent=1 // pred_check_branch
      %30 = sbr.rel (0) target = $region17
    $region16: #{nao_forward.1} parent=1 // pred_region
      _
    $region17: #{nao_forward.1} parent=1 // pred_fallthru
      _
    // Predicated region
    $region18: #{nao_forward.1} parent=1 // pred_check
      _
    $region19: #{nao_forward.1} parent=1 // pred_check_branch
      %32 = sbr.rel (0) target = $region21
    $region20: #{nao_forward.1} parent=1 // pred_region
      _
    $region21: #{nao_forward.1} parent=1 // pred_fallthru
      _
    // Predicated region
    $region22: #{nao_forward.1} parent=1 // pred_check
      _
    $region23: #{nao_forward.1} parent=1 // pred_check_branch
      %34 = sbr.rel (0) target = $region25
    $region24: #{nao_forward.1} parent=1 // pred_region
      _
    $region25: #{nao_forward.1} parent=1 // pred_fallthru
      _
    // Predicated region
    $region26: #{nao_forward.1} parent=1 // pred_check
      _
    $region27: #{nao_forward.1} parent=1 // pred_check_branch
      %36 = sbr.rel (0) target = $region29
    $region28: #{nao_forward.1} parent=1 // pred_region
      _
    $region29: #{nao_forward.1} parent=1 // pred_fallthru
      _
    // Predicated region
    $region30: #{nao_forward.1} parent=1 // pred_check
      _
    $region31: #{nao_forward.1} parent=1 // pred_check_branch
      %38 = sbr.rel (0) target = $region33
    $region32: #{nao_forward.1} parent=1 // pred_region
      _
    $region33: #{nao_forward.1} parent=1 // pred_fallthru
      _
    // Predicated region
    $region34: #{nao_forward.1} parent=1 // pred_check
      _
    $region35: #{nao_forward.1} parent=1 // pred_check_branch
      %40 = sbr.rel (0) target = $region37
    $region36: #{nao_forward.1} parent=1 // pred_region
      %s42 = ssub.s32 32, 32
      %43 = vsyncadd [#allocation8], %s42
      %s45 = sshll.u32 [#allocation7], 4
      %s46 = int_to_ptr.vmem [resolvable:$true] %s45
      %48 = dma.hbm_to_vmem [thread:$0]  %s8, 32, %s46, [#allocation8]
    $region37: #{nao_forward.1} parent=1 // pred_fallthru
      _
    // Predicated region
    $region38: #{nao_forward.1} parent=1 // pred_check
      _
    $region39: #{nao_forward.1} parent=1 // pred_check_branch
      %50 = sbr.rel (0) target = $region41
    $region40: #{nao_forward.1} parent=1 // pred_region
      _
    $region41: #{nao_forward.1} parent=1 // pred_fallthru
      _
    // Predicated region
    $region42: #{nao_forward.1} parent=1 // pred_check
      _
    $region43: #{nao_forward.1} parent=1 // pred_check_branch
      %52 = sbr.rel (0) target = $region45
    $region44: #{nao_forward.1} parent=1 // pred_region
      _
    $region45: #{nao_forward.1} parent=1 // pred_fallthru
      _
    // Predicated region
    $region46: #{nao_forward.1} parent=1 // pred_check
      _
    $region47: #{nao_forward.1} parent=1 // pred_check_branch
      %54 = sbr.rel (0) target = $region49
    $region48: #{nao_forward.1} parent=1 // pred_region
      _
    $region49: #{nao_forward.1} parent=1 // pred_fallthru
      _
    // Predicated region
    $region50: #{nao_forward.1} parent=1 // pred_check
      _
    $region51: #{nao_forward.1} parent=1 // pred_check_branch
      %56 = sbr.rel (0) target = $region53
    $region52: #{nao_forward.1} parent=1 // pred_region
      _
    $region53: #{nao_forward.1} parent=1 // pred_fallthru
      _
    // Predicated region
    $region54: #{nao_forward.1} parent=1 // pred_check
      _
    $region55: #{nao_forward.1} parent=1 // pred_check_branch
      %58 = sbr.rel (0) target = $region57
    $region56: #{nao_forward.1} parent=1 // pred_region
      %59 = dma.done [#allocation8], 32
    $region57: #{nao_forward.1} parent=1 // pred_fallthru
      _
    %v60 = vld [vmem:[%s5] sm:$0xff]
    %v61 = vld [vmem:[%s5 + $0x8] sm:$0xff]
    %v62 = vld [vmem:[%s5 + $0x10] sm:$0xff]
    %v63 = vld [vmem:[%s5 + $0x18] sm:$0xff]
    %s64 = scalar_lea.vmem %s5, 32
    %v65 = vld [vmem:[%s64] sm:$0xff]
    %v66 = vld [vmem:[%s64 + $0x8] sm:$0xff]
    %v67 = vld [vmem:[%s64 + $0x10] sm:$0xff]
    %v68 = vld [vmem:[%s64 + $0x18] sm:$0xff]
    %s69 = scalar_lea.vmem %s5, 64
    %v70 = vld [vmem:[%s69] sm:$0xff]
    %v71 = vld [vmem:[%s69 + $0x8] sm:$0xff]
    %v72 = vld [vmem:[%s69 + $0x10] sm:$0xff]
    %v73 = vld [vmem:[%s69 + $0x18] sm:$0xff]
    %s74 = scalar_lea.vmem %s5, 96
    %v75 = vld [vmem:[%s74] sm:$0xff]
    %v76 = vld [vmem:[%s74 + $0x8] sm:$0xff]
    %v77 = vld [vmem:[%s74 + $0x10] sm:$0xff]
    %v78 = vld [vmem:[%s74 + $0x18] sm:$0xff]
    %v79 = vld [vmem:[%s6] sm:$0x1]
    %v80 = vld [vmem:[%s6 + $0x1] sm:$0x1]
    %v81 = vld [vmem:[%s0] sm:$0xff]
    %v82 = vld [vmem:[%s0 + $0x8] sm:$0xff]
    %v83 = vlaneseq
    %v84 = vand.u32 %v83, 127
    %85 = vset.pattern.permute.xlu0 0
    %86 = vperm.xlu0 %85, %v81
    %v87 = vpop.permute.xlu0 %86
    %88 = vset.pattern.permute.xlu0 0
    %89 = vperm.xlu0 %88, %v82
    %v90 = vpop.permute.xlu0 %89
    %vm91 = vcmp.eq.s32.totalorder %v87, %v84
    %vm92 = vcmp.eq.s32.totalorder %v90, %v84
    %v93 = vsel %vm91, 1, 0
    %v94 = vsel %vm92, 1, 0
    %v95 = vcvt.s32.f32 %v93
    %v96 = vcvt.s32.f32 %v94
    %v97 = vld [vmem:[%s4] sm:$0xff]
    %v98 = vld [vmem:[%s4 + $0x8] sm:$0xf]
    %vm99 = vcmask 261120
    %v101 = vsel %vm99, %v97, 0
    %v104 = vsel %vm99, %v98, 0
    %106 = vmatprep.subr.mxu0 0.0
    %107 = vmatpush1.msra.mxu0 %v60
    %108 = vmatprep.subr.mxu0 0.0
    %109 = vmatpush1.msra.mxu0 %v61
    %110 = vmatprep.subr.mxu0 0.0
    %111 = vmatpush1.msra.mxu0 %v62
    %112 = vmatprep.subr.mxu0 0.0
    %113 = vmatpush1.msra.mxu0 %v63
    %114 = vmatprep.subr.mxu0 0.0
    %115 = vmatpush1.msra.mxu0 0.0
    %116 = vmatprep.subr.mxu0 0.0
    %117 = vmatpush1.msra.mxu0 0.0
    %118 = vmatprep.subr.mxu0 0.0
    %119 = vmatpush1.msra.mxu0 0.0
    %120 = vmatprep.subr.mxu0 0.0
    %121 = vmatpush1.msra.mxu0 0.0
    %122 = vmatprep.subr.mxu0 0.0
    %123 = vmatpush1.msra.mxu0 0.0
    %124 = vmatprep.subr.mxu0 0.0
    %125 = vmatpush1.msra.mxu0 0.0
    %126 = vmatprep.subr.mxu0 0.0
    %127 = vmatpush1.msra.mxu0 0.0
    %128 = vmatprep.subr.mxu0 0.0
    %129 = vmatpush1.msra.mxu0 0.0
    %130 = vmatprep.subr.mxu0 0.0
    %131 = vmatpush1.msra.mxu0 0.0
    %132 = vmatprep.subr.mxu0 0.0
    %133 = vmatpush1.msra.mxu0 0.0
    %134 = vmatprep.subr.mxu0 0.0
    %135 = vmatpush1.msra.mxu0 0.0
    %136 = vmatprep.subr.mxu0 0.0
    %137 = vmatpush1.msra.mxu0 0.0
    %138 = vmatprep.subr.mxu0 0.0
    %139 = vmatpush1.msra.mxu0 0.0
    %140 = vmatprep.subr.mxu0 0.0
    %141 = vmatpush1.msra.mxu0 0.0
    %142 = vmatprep.subr.mxu0 0.0
    %143 = vmatpush1.msra.mxu0 0.0
    %144 = vmatprep.subr.mxu0 0.0
    %145 = vmatpush1.msra.mxu0 0.0
    %146 = vmatprep.subr.mxu0 0.0
    %147 = vmatpush1.msra.mxu0 0.0
    %148 = vmatprep.subr.mxu0 0.0
    %149 = vmatpush1.msra.mxu0 0.0
    %150 = vmatprep.subr.mxu0 0.0
    %151 = vmatpush1.msra.mxu0 0.0
    %152 = vmatprep.subr.mxu0 0.0
    %153 = vmatpush1.msra.mxu0 0.0
    %154 = vmatprep.subr.mxu0 0.0
    %155 = vmatpush1.msra.mxu0 0.0
    %156 = vmatprep.subr.mxu0 0.0
    %157 = vmatpush1.msra.mxu0 0.0
    %158 = vmatprep.subr.mxu0 0.0
    %159 = vmatpush1.msra.mxu0 0.0
    %160 = vmatprep.subr.mxu0 0.0
    %161 = vmatpush1.msra.mxu0 0.0
    %162 = vmatprep.subr.mxu0 0.0
    %163 = vmatpush1.msra.mxu0 0.0
    %164 = vmatprep.subr.mxu0 0.0
    %165 = vmatpush1.msra.mxu0 0.0
    %166 = vmatprep.subr.mxu0 0.0
    %167 = vmatpush1.msra.mxu0 0.0
    %168 = vmatprep.subr.mxu0 0.0
    %169 = vmatpush1.msra.mxu0 0.0
    %170 = vmatprep.mubr.f32.mxu0 0.0
    %171 = vmatmul.mubr.f32.gmra.mrb[0].mxu0 %v101
    %v172 = vpop.f32.mrb[0].mxu0
    %v173 = vadd.f32 0.0, %v172
    %v174 = vpop.f32.mrb[0].mxu0
    %175 = vmatprep.mubr.f32.mxu0 0.0
    %176 = vmatmul.mubr.f32.gmra.mrb[0].mxu0 %v104
    %v177 = vpop.f32.mrb[0].mxu0
    %v178 = vadd.f32 0.0, %v177
    %v179 = vpop.f32.mrb[0].mxu0
    %180 = vdwg.mxu0
    %v181 = vlaneseq
    %v182 = vshrl.u32 %v181, 7
    %v183 = vsub.s32 0, %v182
    %v184 = vrot.slane %v79, %v183
    %vm185 = vcmask 97280
    %v187 = vsel %vm185, %v95, 0
    %v190 = vsel %vm185, %v96, 0
    %vm192 = vcmask 1043456
    %v194 = vsel %vm192, %v178, 0
    %196 = vmatprep.subr.mxu0 0.0
    %197 = vmatpush1.msra.mxu0 %v173
    %198 = vmatprep.subr.mxu0 0.0
    %199 = vmatpush1.msra.mxu0 %v194
    %200 = vmatprep.subr.mxu0 0.0
    %201 = vmatpush1.msra.mxu0 0.0
    %202 = vmatprep.subr.mxu0 0.0
    %203 = vmatpush1.msra.mxu0 0.0
    %204 = vmatprep.subr.mxu0 0.0
    %205 = vmatpush1.msra.mxu0 0.0
    %206 = vmatprep.subr.mxu0 0.0
    %207 = vmatpush1.msra.mxu0 0.0
    %208 = vmatprep.subr.mxu0 0.0
    %209 = vmatpush1.msra.mxu0 0.0
    %210 = vmatprep.subr.mxu0 0.0
    %211 = vmatpush1.msra.mxu0 0.0
    %212 = vmatprep.subr.mxu0 0.0
    %213 = vmatpush1.msra.mxu0 0.0
    %214 = vmatprep.subr.mxu0 0.0
    %215 = vmatpush1.msra.mxu0 0.0
    %216 = vmatprep.subr.mxu0 0.0
    %217 = vmatpush1.msra.mxu0 0.0
    %218 = vmatprep.subr.mxu0 0.0
    %219 = vmatpush1.msra.mxu0 0.0
    %220 = vmatprep.subr.mxu0 0.0
    %221 = vmatpush1.msra.mxu0 0.0
    %222 = vmatprep.subr.mxu0 0.0
    %223 = vmatpush1.msra.mxu0 0.0
    %224 = vmatprep.subr.mxu0 0.0
    %225 = vmatpush1.msra.mxu0 0.0
    %226 = vmatprep.subr.mxu0 0.0
    %227 = vmatpush1.msra.mxu0 0.0
    %228 = vmatprep.subr.mxu0 0.0
    %229 = vmatpush1.msra.mxu0 0.0
    %230 = vmatprep.subr.mxu0 0.0
    %231 = vmatpush1.msra.mxu0 0.0
    %232 = vmatprep.subr.mxu0 0.0
    %233 = vmatpush1.msra.mxu0 0.0
    %234 = vmatprep.subr.mxu0 0.0
    %235 = vmatpush1.msra.mxu0 0.0
    %236 = vmatprep.subr.mxu0 0.0
    %237 = vmatpush1.msra.mxu0 0.0
    %238 = vmatprep.subr.mxu0 0.0
    %239 = vmatpush1.msra.mxu0 0.0
    %240 = vmatprep.subr.mxu0 0.0
    %241 = vmatpush1.msra.mxu0 0.0
    %242 = vmatprep.subr.mxu0 0.0
    %243 = vmatpush1.msra.mxu0 0.0
    %244 = vmatprep.subr.mxu0 0.0
    %245 = vmatpush1.msra.mxu0 0.0
    %246 = vmatprep.subr.mxu0 0.0
    %247 = vmatpush1.msra.mxu0 0.0
    %248 = vmatprep.subr.mxu0 0.0
    %249 = vmatpush1.msra.mxu0 0.0
    %250 = vmatprep.subr.mxu0 0.0
    %251 = vmatpush1.msra.mxu0 0.0
    %252 = vmatprep.subr.mxu0 0.0
    %253 = vmatpush1.msra.mxu0 0.0
    %254 = vmatprep.subr.mxu0 0.0
    %255 = vmatpush1.msra.mxu0 0.0
    %256 = vmatprep.subr.mxu0 0.0
    %257 = vmatpush1.msra.mxu0 0.0
    %258 = vmatprep.subr.mxu0 0.0
    %259 = vmatpush1.msra.mxu0 0.0
    %260 = vmatprep.mubr.f32.mxu0 0.0
    %261 = vmatmul.mubr.f32.gmra.mrb[0].mxu0 %v187
    %v262 = vpop.f32.mrb[0].mxu0
    %v263 = vadd.f32 %v184, %v262
    %v264 = vpop.f32.mrb[0].mxu0
    %265 = vmatprep.mubr.f32.mxu0 0.0
    %266 = vmatmul.mubr.f32.gmra.mrb[0].mxu0 %v190
    %v267 = vpop.f32.mrb[0].mxu0
    %v268 = vadd.f32 %v184, %v267
    %v269 = vpop.f32.mrb[0].mxu0
    %270 = vdwg.mxu0
    %271 = vst [vmem:[#allocation2] sm:$0xff] %v263
    %272 = vst [vmem:[#allocation2 + $0x8] sm:$0xff] %v268
    %v273 = vld [vmem:[%s1] sm:$0xff]
    %v274 = vld [vmem:[%s1 + $0x8] sm:$0xff]
    %275 = vset.pattern.permute.xlu0 0
    %276 = vperm.xlu0 %275, %v273
    %v277 = vpop.permute.xlu0 %276
    %278 = vset.pattern.permute.xlu0 0
    %279 = vperm.xlu0 %278, %v274
    %v280 = vpop.permute.xlu0 %279
    %vm281 = vcmp.eq.s32.totalorder %v277, %v84
    %vm282 = vcmp.eq.s32.totalorder %v280, %v84
    %v283 = vsel %vm281, 1, 0
    %v284 = vsel %vm282, 1, 0
    %v285 = vcvt.s32.f32 %v283
    %v286 = vcvt.s32.f32 %v284
    %s287 = scalar_lea.vmem %s4, 16
    %v288 = vld [vmem:[%s287] sm:$0xff]
    %v289 = vld [vmem:[%s287 + $0x8] sm:$0xf]
    %v291 = vsel %vm99, %v288, 0
    %v294 = vsel %vm99, %v289, 0
    %296 = vmatprep.subr.mxu0 0.0
    %297 = vmatpush1.msra.mxu0 %v70
    %298 = vmatprep.subr.mxu0 0.0
    %299 = vmatpush1.msra.mxu0 %v71
    %300 = vmatprep.subr.mxu0 0.0
    %301 = vmatpush1.msra.mxu0 %v72
    %302 = vmatprep.subr.mxu0 0.0
    %303 = vmatpush1.msra.mxu0 %v73
    %304 = vmatprep.subr.mxu0 0.0
    %305 = vmatpush1.msra.mxu0 0.0
    %306 = vmatprep.subr.mxu0 0.0
    %307 = vmatpush1.msra.mxu0 0.0
    %308 = vmatprep.subr.mxu0 0.0
    %309 = vmatpush1.msra.mxu0 0.0
    %310 = vmatprep.subr.mxu0 0.0
    %311 = vmatpush1.msra.mxu0 0.0
    %312 = vmatprep.subr.mxu0 0.0
    %313 = vmatpush1.msra.mxu0 0.0
    %314 = vmatprep.subr.mxu0 0.0
    %315 = vmatpush1.msra.mxu0 0.0
    %316 = vmatprep.subr.mxu0 0.0
    %317 = vmatpush1.msra.mxu0 0.0
    %318 = vmatprep.subr.mxu0 0.0
    %319 = vmatpush1.msra.mxu0 0.0
    %320 = vmatprep.subr.mxu0 0.0
    %321 = vmatpush1.msra.mxu0 0.0
    %322 = vmatprep.subr.mxu0 0.0
    %323 = vmatpush1.msra.mxu0 0.0
    %324 = vmatprep.subr.mxu0 0.0
    %325 = vmatpush1.msra.mxu0 0.0
    %326 = vmatprep.subr.mxu0 0.0
    %327 = vmatpush1.msra.mxu0 0.0
    %328 = vmatprep.subr.mxu0 0.0
    %329 = vmatpush1.msra.mxu0 0.0
    %330 = vmatprep.subr.mxu0 0.0
    %331 = vmatpush1.msra.mxu0 0.0
    %332 = vmatprep.subr.mxu0 0.0
    %333 = vmatpush1.msra.mxu0 0.0
    %334 = vmatprep.subr.mxu0 0.0
    %335 = vmatpush1.msra.mxu0 0.0
    %336 = vmatprep.subr.mxu0 0.0
    %337 = vmatpush1.msra.mxu0 0.0
    %338 = vmatprep.subr.mxu0 0.0
    %339 = vmatpush1.msra.mxu0 0.0
    %340 = vmatprep.subr.mxu0 0.0
    %341 = vmatpush1.msra.mxu0 0.0
    %342 = vmatprep.subr.mxu0 0.0
    %343 = vmatpush1.msra.mxu0 0.0
    %344 = vmatprep.subr.mxu0 0.0
    %345 = vmatpush1.msra.mxu0 0.0
    %346 = vmatprep.subr.mxu0 0.0
    %347 = vmatpush1.msra.mxu0 0.0
    %348 = vmatprep.subr.mxu0 0.0
    %349 = vmatpush1.msra.mxu0 0.0
    %350 = vmatprep.subr.mxu0 0.0
    %351 = vmatpush1.msra.mxu0 0.0
    %352 = vmatprep.subr.mxu0 0.0
    %353 = vmatpush1.msra.mxu0 0.0
    %354 = vmatprep.subr.mxu0 0.0
    %355 = vmatpush1.msra.mxu0 0.0
    %356 = vmatprep.subr.mxu0 0.0
    %357 = vmatpush1.msra.mxu0 0.0
    %358 = vmatprep.subr.mxu0 0.0
    %359 = vmatpush1.msra.mxu0 0.0
    %360 = vmatprep.mubr.f32.mxu0 0.0
    %361 = vmatmul.mubr.f32.gmra.mrb[0].mxu0 %v291
    %v362 = vpop.f32.mrb[0].mxu0
    %v363 = vadd.f32 0.0, %v362
    %v364 = vpop.f32.mrb[0].mxu0
    %365 = vmatprep.mubr.f32.mxu0 0.0
    %366 = vmatmul.mubr.f32.gmra.mrb[0].mxu0 %v294
    %v367 = vpop.f32.mrb[0].mxu0
    %v368 = vadd.f32 0.0, %v367
    %v369 = vpop.f32.mrb[0].mxu0
    %370 = vdwg.mxu0
    %v371 = vlaneseq
    %v372 = vshrl.u32 %v371, 7
    %v373 = vsub.s32 0, %v372
    %v374 = vrot.slane %v80, %v373
    %v376 = vsel %vm185, %v285, 0
    %v379 = vsel %vm185, %v286, 0
    %v382 = vsel %vm192, %v368, 0
    %384 = vmatprep.subr.mxu0 0.0
    %385 = vmatpush1.msra.mxu0 %v363
    %386 = vmatprep.subr.mxu0 0.0
    %387 = vmatpush1.msra.mxu0 %v382
    %388 = vmatprep.subr.mxu0 0.0
    %389 = vmatpush1.msra.mxu0 0.0
    %390 = vmatprep.subr.mxu0 0.0
    %391 = vmatpush1.msra.mxu0 0.0
    %392 = vmatprep.subr.mxu0 0.0
    %393 = vmatpush1.msra.mxu0 0.0
    %394 = vmatprep.subr.mxu0 0.0
    %395 = vmatpush1.msra.mxu0 0.0
    %396 = vmatprep.subr.mxu0 0.0
    %397 = vmatpush1.msra.mxu0 0.0
    %398 = vmatprep.subr.mxu0 0.0
    %399 = vmatpush1.msra.mxu0 0.0
    %400 = vmatprep.subr.mxu0 0.0
    %401 = vmatpush1.msra.mxu0 0.0
    %402 = vmatprep.subr.mxu0 0.0
    %403 = vmatpush1.msra.mxu0 0.0
    %404 = vmatprep.subr.mxu0 0.0
    %405 = vmatpush1.msra.mxu0 0.0
    %406 = vmatprep.subr.mxu0 0.0
    %407 = vmatpush1.msra.mxu0 0.0
    %408 = vmatprep.subr.mxu0 0.0
    %409 = vmatpush1.msra.mxu0 0.0
    %410 = vmatprep.subr.mxu0 0.0
    %411 = vmatpush1.msra.mxu0 0.0
    %412 = vmatprep.subr.mxu0 0.0
    %413 = vmatpush1.msra.mxu0 0.0
    %414 = vmatprep.subr.mxu0 0.0
    %415 = vmatpush1.msra.mxu0 0.0
    %416 = vmatprep.subr.mxu0 0.0
    %417 = vmatpush1.msra.mxu0 0.0
    %418 = vmatprep.subr.mxu0 0.0
    %419 = vmatpush1.msra.mxu0 0.0
    %420 = vmatprep.subr.mxu0 0.0
    %421 = vmatpush1.msra.mxu0 0.0
    %422 = vmatprep.subr.mxu0 0.0
    %423 = vmatpush1.msra.mxu0 0.0
    %424 = vmatprep.subr.mxu0 0.0
    %425 = vmatpush1.msra.mxu0 0.0
    %426 = vmatprep.subr.mxu0 0.0
    %427 = vmatpush1.msra.mxu0 0.0
    %428 = vmatprep.subr.mxu0 0.0
    %429 = vmatpush1.msra.mxu0 0.0
    %430 = vmatprep.subr.mxu0 0.0
    %431 = vmatpush1.msra.mxu0 0.0
    %432 = vmatprep.subr.mxu0 0.0
    %433 = vmatpush1.msra.mxu0 0.0
    %434 = vmatprep.subr.mxu0 0.0
    %435 = vmatpush1.msra.mxu0 0.0
    %436 = vmatprep.subr.mxu0 0.0
    %437 = vmatpush1.msra.mxu0 0.0
    %438 = vmatprep.subr.mxu0 0.0
    %439 = vmatpush1.msra.mxu0 0.0
    %440 = vmatprep.subr.mxu0 0.0
    %441 = vmatpush1.msra.mxu0 0.0
    %442 = vmatprep.subr.mxu0 0.0
    %443 = vmatpush1.msra.mxu0 0.0
    %444 = vmatprep.subr.mxu0 0.0
    %445 = vmatpush1.msra.mxu0 0.0
    %446 = vmatprep.subr.mxu0 0.0
    %447 = vmatpush1.msra.mxu0 0.0
    %448 = vmatprep.mubr.f32.mxu0 0.0
    %449 = vmatmul.mubr.f32.gmra.mrb[0].mxu0 %v376
    %v450 = vpop.f32.mrb[0].mxu0
    %v451 = vadd.f32 %v374, %v450
    %v452 = vpop.f32.mrb[0].mxu0
    %453 = vmatprep.mubr.f32.mxu0 0.0
    %454 = vmatmul.mubr.f32.gmra.mrb[0].mxu0 %v379
    %v455 = vpop.f32.mrb[0].mxu0
    %v456 = vadd.f32 %v374, %v455
    %v457 = vpop.f32.mrb[0].mxu0
    %458 = vdwg.mxu0
    %459 = vst [vmem:[#allocation4] sm:$0xff] %v451
    %460 = vst [vmem:[#allocation4 + $0x8] sm:$0xff] %v456
    loop: start=0, step=1, limit=8
    $region58: #{nao_forward.1} parent=1 // loop_pre_header
      _
    $region59: #{nao_forward.1} parent=1 // loop_header
      %s462 = sphi 0, %s466
      %p463 = scmp.ge.s32.totalorder %s462, 8
      %v467 = vphi 0.0, %v572
      %v468 = vphi 0.0, %v566
      %v469 = vphi 0.0, %v591
    $region60: #{nao_forward.1} parent=1 // loop_header_branch
      %465 = sbr.rel (%p463) target = $region64
    $region61: #{nao_forward.1} parent=1 // loop_body
      %s470 = smul.u32 %s462, 2
      %s471 = scalar_lea.vmem [#allocation2], %s470
      %v472 = vld [vmem:[%s471] sm:$0x3]
      %474 = vrot.lane.b32.xlu0 %v467, 32
      %v475 = vpop.permute.xlu0 %474
      %v476 = vsel %vm99, %v475, 0
      %478 = vmatprep.subr.mxu0 0.0
      %479 = vmatpush1.msra.mxu0 %v65
      %480 = vmatprep.subr.mxu0 0.0
      %481 = vmatpush1.msra.mxu0 %v66
      %482 = vmatprep.subr.mxu0 0.0
      %483 = vmatpush1.msra.mxu0 %v67
      %484 = vmatprep.subr.mxu0 0.0
      %485 = vmatpush1.msra.mxu0 %v68
      %486 = vmatprep.subr.mxu0 0.0
      %487 = vmatpush1.msra.mxu0 0.0
      %488 = vmatprep.subr.mxu0 0.0
      %489 = vmatpush1.msra.mxu0 0.0
      %490 = vmatprep.subr.mxu0 0.0
      %491 = vmatpush1.msra.mxu0 0.0
      %492 = vmatprep.subr.mxu0 0.0
      %493 = vmatpush1.msra.mxu0 0.0
      %494 = vmatprep.subr.mxu0 0.0
      %495 = vmatpush1.msra.mxu0 0.0
      %496 = vmatprep.subr.mxu0 0.0
      %497 = vmatpush1.msra.mxu0 0.0
      %498 = vmatprep.subr.mxu0 0.0
      %499 = vmatpush1.msra.mxu0 0.0
      %500 = vmatprep.subr.mxu0 0.0
      %501 = vmatpush1.msra.mxu0 0.0
      %502 = vmatprep.subr.mxu0 0.0
      %503 = vmatpush1.msra.mxu0 0.0
      %504 = vmatprep.subr.mxu0 0.0
      %505 = vmatpush1.msra.mxu0 0.0
      %506 = vmatprep.subr.mxu0 0.0
      %507 = vmatpush1.msra.mxu0 0.0
      %508 = vmatprep.subr.mxu0 0.0
      %509 = vmatpush1.msra.mxu0 0.0
      %510 = vmatprep.subr.mxu0 0.0
      %511 = vmatpush1.msra.mxu0 0.0
      %512 = vmatprep.subr.mxu0 0.0
      %513 = vmatpush1.msra.mxu0 0.0
      %514 = vmatprep.subr.mxu0 0.0
      %515 = vmatpush1.msra.mxu0 0.0
      %516 = vmatprep.subr.mxu0 0.0
      %517 = vmatpush1.msra.mxu0 0.0
      %518 = vmatprep.subr.mxu0 0.0
      %519 = vmatpush1.msra.mxu0 0.0
      %520 = vmatprep.subr.mxu0 0.0
      %521 = vmatpush1.msra.mxu0 0.0
      %522 = vmatprep.subr.mxu0 0.0
      %523 = vmatpush1.msra.mxu0 0.0
      %524 = vmatprep.subr.mxu0 0.0
      %525 = vmatpush1.msra.mxu0 0.0
      %526 = vmatprep.subr.mxu0 0.0
      %527 = vmatpush1.msra.mxu0 0.0
      %528 = vmatprep.subr.mxu0 0.0
      %529 = vmatpush1.msra.mxu0 0.0
      %530 = vmatprep.subr.mxu0 0.0
      %531 = vmatpush1.msra.mxu0 0.0
      %532 = vmatprep.subr.mxu0 0.0
      %533 = vmatpush1.msra.mxu0 0.0
      %534 = vmatprep.subr.mxu0 0.0
      %535 = vmatpush1.msra.mxu0 0.0
      %536 = vmatprep.subr.mxu0 0.0
      %537 = vmatpush1.msra.mxu0 0.0
      %538 = vmatprep.subr.mxu0 0.0
      %539 = vmatpush1.msra.mxu0 0.0
      %540 = vmatprep.subr.mxu0 0.0
      %541 = vmatpush1.msra.mxu0 0.0
      %542 = vmatprep.mubr.f32.mxu0 0.0
      %543 = vmatmul.mubr.f32.gmra.mrb[0].mxu0 %v476
      %v544 = vpop.f32.mrb[0].mxu0
      %v545 = vadd.f32 0.0, %v544
      %v546 = vpop.f32.mrb[0].mxu0
      %547 = vdwg.mxu0
      %v548 = vadd.f32 %v472, %v545
      %v549 = vxor.u32 %v548, 2147483648
      %v550 = vmul.f32 %v549, 1.442695
      %v551 = vpow.pop %v550
      %v552 = vadd.f32 %v551, 1.0
      %v553 = vrcp.pop %v552
      %v554 = vmul.f32 1.0, %v553
      %v555 = vtanh.pop %v548
      %v556 = vmul.f32 %v554, %v468
      %558 = vrot.lane.b32.xlu0 %v555, 64
      %v559 = vpop.permute.xlu0 %558
      %v561 = vmul.f32 %v554, %v559
      %563 = vrot.lane.b32.xlu0 %v561, 32
      %v564 = vpop.permute.xlu0 %563
      %v566 = vadd.f32 %v556, %v564
      %v567 = vtanh.pop %v566
      %569 = vrot.lane.b32.xlu0 %v567, 64
      %v570 = vpop.permute.xlu0 %569
      %v572 = vmul.f32 %v554, %v570
      %v573 = vmul.f32 %v572, %v572
      %575 = vrot.lane.b32.xlu0 %v573, 32
      %v576 = vpop.permute.xlu0 %575
      %vm578 = vcmask 254976
      %v579 = vsel %vm578, %v576, 0.0
      %580 = vadd.xlane.f32.xlu0 %v579
      %v581 = vpop.xlane.xlu0 %580
      %v582 = vmax.f32 %v581, 1e-24
      %v583 = vrsqrt.pop %v582
      %v584 = vmul.f32 %v572, %v583
      %586 = vrot.lane.b32.xlu0 %v584, 32
      %v587 = vpop.permute.xlu0 %586
      %s589 = scalar_lea.vmem [#allocation3], %s470
      %590 = vst.msk [vmem:[%s589] sm:$0x3] %vm578, %v587
      %v591 = vadd.f32 %v469, %v584
    $region62: #{nao_forward.1} parent=1 // loop_footer
      %s466 = sadd.s32 1, %s462
    $region63: #{nao_forward.1} parent=1 // loop_footer_branch
      %461 = sbr.rel target = $region59
    $region64: #{nao_forward.1} parent=1 // loop_exit
      _
    %v592 = vmul.f32 %v469, 0.125
    %v593 = vmul.f32 %v592, %v592
    %595 = vrot.lane.b32.xlu0 %v593, 32
    %v596 = vpop.permute.xlu0 %595
    %vm598 = vcmask 254976
    %v599 = vsel %vm598, %v596, 0.0
    %600 = vadd.xlane.f32.xlu0 %v599
    %v601 = vpop.xlane.xlu0 %600
    %v602 = vmax.f32 %v601, 1e-24
    %v603 = vrsqrt.pop %v602
    %v604 = vmul.f32 %v592, %v603
    %v605 = vld [vmem:[%s7] sm:$0xff]
    %v606 = vld [vmem:[%s7 + $0x8] sm:$0xff]
    %v607 = vld [vmem:[%s7 + $0x10] sm:$0xff]
    %v608 = vld [vmem:[%s7 + $0x18] sm:$0xff]
    %v609 = vld [vmem:[#allocation7] sm:$0x1]
    %v610 = vlaneseq
    %v611 = vshrl.u32 %v610, 7
    %v612 = vsub.s32 0, %v611
    %v613 = vrot.slane %v609, %v612
    %615 = vrot.lane.b32.xlu0 %v604, 32
    %v616 = vpop.permute.xlu0 %615
    %v617 = vsel %vm99, %v616, 0
    %619 = vmatprep.subr.mxu0 0.0
    %620 = vmatpush1.msra.mxu0 %v605
    %621 = vmatprep.subr.mxu0 0.0
    %622 = vmatpush1.msra.mxu0 %v606
    %623 = vmatprep.subr.mxu0 0.0
    %624 = vmatpush1.msra.mxu0 %v607
    %625 = vmatprep.subr.mxu0 0.0
    %626 = vmatpush1.msra.mxu0 %v608
    %627 = vmatprep.subr.mxu0 0.0
    %628 = vmatpush1.msra.mxu0 0.0
    %629 = vmatprep.subr.mxu0 0.0
    %630 = vmatpush1.msra.mxu0 0.0
    %631 = vmatprep.subr.mxu0 0.0
    %632 = vmatpush1.msra.mxu0 0.0
    %633 = vmatprep.subr.mxu0 0.0
    %634 = vmatpush1.msra.mxu0 0.0
    %635 = vmatprep.subr.mxu0 0.0
    %636 = vmatpush1.msra.mxu0 0.0
    %637 = vmatprep.subr.mxu0 0.0
    %638 = vmatpush1.msra.mxu0 0.0
    %639 = vmatprep.subr.mxu0 0.0
    %640 = vmatpush1.msra.mxu0 0.0
    %641 = vmatprep.subr.mxu0 0.0
    %642 = vmatpush1.msra.mxu0 0.0
    %643 = vmatprep.subr.mxu0 0.0
    %644 = vmatpush1.msra.mxu0 0.0
    %645 = vmatprep.subr.mxu0 0.0
    %646 = vmatpush1.msra.mxu0 0.0
    %647 = vmatprep.subr.mxu0 0.0
    %648 = vmatpush1.msra.mxu0 0.0
    %649 = vmatprep.subr.mxu0 0.0
    %650 = vmatpush1.msra.mxu0 0.0
    %651 = vmatprep.subr.mxu0 0.0
    %652 = vmatpush1.msra.mxu0 0.0
    %653 = vmatprep.subr.mxu0 0.0
    %654 = vmatpush1.msra.mxu0 0.0
    %655 = vmatprep.subr.mxu0 0.0
    %656 = vmatpush1.msra.mxu0 0.0
    %657 = vmatprep.subr.mxu0 0.0
    %658 = vmatpush1.msra.mxu0 0.0
    %659 = vmatprep.subr.mxu0 0.0
    %660 = vmatpush1.msra.mxu0 0.0
    %661 = vmatprep.subr.mxu0 0.0
    %662 = vmatpush1.msra.mxu0 0.0
    %663 = vmatprep.subr.mxu0 0.0
    %664 = vmatpush1.msra.mxu0 0.0
    %665 = vmatprep.subr.mxu0 0.0
    %666 = vmatpush1.msra.mxu0 0.0
    %667 = vmatprep.subr.mxu0 0.0
    %668 = vmatpush1.msra.mxu0 0.0
    %669 = vmatprep.subr.mxu0 0.0
    %670 = vmatpush1.msra.mxu0 0.0
    %671 = vmatprep.subr.mxu0 0.0
    %672 = vmatpush1.msra.mxu0 0.0
    %673 = vmatprep.subr.mxu0 0.0
    %674 = vmatpush1.msra.mxu0 0.0
    %675 = vmatprep.subr.mxu0 0.0
    %676 = vmatpush1.msra.mxu0 0.0
    %677 = vmatprep.subr.mxu0 0.0
    %678 = vmatpush1.msra.mxu0 0.0
    %679 = vmatprep.subr.mxu0 0.0
    %680 = vmatpush1.msra.mxu0 0.0
    %681 = vmatprep.subr.mxu0 0.0
    %682 = vmatpush1.msra.mxu0 0.0
    %683 = vmatprep.mubr.f32.mxu0 0.0
    %684 = vmatmul.mubr.f32.gmra.mrb[0].mxu0 %v617
    %v685 = vpop.f32.mrb[0].mxu0
    %v686 = vadd.f32 %v613, %v685
    %v687 = vpop.f32.mrb[0].mxu0
    %688 = vdwg.mxu0
    %v689 = vmax.f32 %v686, 0.0
    %s690 = scalar_lea.vmem %s7, 32
    %v691 = vld [vmem:[%s690] sm:$0xff]
    %v692 = vld [vmem:[%s690 + $0x8] sm:$0xff]
    %v693 = vld [vmem:[%s690 + $0x10] sm:$0xff]
    %v694 = vld [vmem:[%s690 + $0x18] sm:$0xff]
    %v695 = vld [vmem:[#allocation7 + $0x1] sm:$0x1]
    %v696 = vlaneseq
    %v697 = vshrl.u32 %v696, 7
    %v698 = vsub.s32 0, %v697
    %v699 = vrot.slane %v695, %v698
    %v701 = vsel %vm99, %v689, 0
    %703 = vmatprep.subr.mxu0 0.0
    %704 = vmatpush1.msra.mxu0 %v691
    %705 = vmatprep.subr.mxu0 0.0
    %706 = vmatpush1.msra.mxu0 %v692
    %707 = vmatprep.subr.mxu0 0.0
    %708 = vmatpush1.msra.mxu0 %v693
    %709 = vmatprep.subr.mxu0 0.0
    %710 = vmatpush1.msra.mxu0 %v694
    %711 = vmatprep.subr.mxu0 0.0
    %712 = vmatpush1.msra.mxu0 0.0
    %713 = vmatprep.subr.mxu0 0.0
    %714 = vmatpush1.msra.mxu0 0.0
    %715 = vmatprep.subr.mxu0 0.0
    %716 = vmatpush1.msra.mxu0 0.0
    %717 = vmatprep.subr.mxu0 0.0
    %718 = vmatpush1.msra.mxu0 0.0
    %719 = vmatprep.subr.mxu0 0.0
    %720 = vmatpush1.msra.mxu0 0.0
    %721 = vmatprep.subr.mxu0 0.0
    %722 = vmatpush1.msra.mxu0 0.0
    %723 = vmatprep.subr.mxu0 0.0
    %724 = vmatpush1.msra.mxu0 0.0
    %725 = vmatprep.subr.mxu0 0.0
    %726 = vmatpush1.msra.mxu0 0.0
    %727 = vmatprep.subr.mxu0 0.0
    %728 = vmatpush1.msra.mxu0 0.0
    %729 = vmatprep.subr.mxu0 0.0
    %730 = vmatpush1.msra.mxu0 0.0
    %731 = vmatprep.subr.mxu0 0.0
    %732 = vmatpush1.msra.mxu0 0.0
    %733 = vmatprep.subr.mxu0 0.0
    %734 = vmatpush1.msra.mxu0 0.0
    %735 = vmatprep.subr.mxu0 0.0
    %736 = vmatpush1.msra.mxu0 0.0
    %737 = vmatprep.subr.mxu0 0.0
    %738 = vmatpush1.msra.mxu0 0.0
    %739 = vmatprep.subr.mxu0 0.0
    %740 = vmatpush1.msra.mxu0 0.0
    %741 = vmatprep.subr.mxu0 0.0
    %742 = vmatpush1.msra.mxu0 0.0
    %743 = vmatprep.subr.mxu0 0.0
    %744 = vmatpush1.msra.mxu0 0.0
    %745 = vmatprep.subr.mxu0 0.0
    %746 = vmatpush1.msra.mxu0 0.0
    %747 = vmatprep.subr.mxu0 0.0
    %748 = vmatpush1.msra.mxu0 0.0
    %749 = vmatprep.subr.mxu0 0.0
    %750 = vmatpush1.msra.mxu0 0.0
    %751 = vmatprep.subr.mxu0 0.0
    %752 = vmatpush1.msra.mxu0 0.0
    %753 = vmatprep.subr.mxu0 0.0
    %754 = vmatpush1.msra.mxu0 0.0
    %755 = vmatprep.subr.mxu0 0.0
    %756 = vmatpush1.msra.mxu0 0.0
    %757 = vmatprep.subr.mxu0 0.0
    %758 = vmatpush1.msra.mxu0 0.0
    %759 = vmatprep.subr.mxu0 0.0
    %760 = vmatpush1.msra.mxu0 0.0
    %761 = vmatprep.subr.mxu0 0.0
    %762 = vmatpush1.msra.mxu0 0.0
    %763 = vmatprep.subr.mxu0 0.0
    %764 = vmatpush1.msra.mxu0 0.0
    %765 = vmatprep.subr.mxu0 0.0
    %766 = vmatpush1.msra.mxu0 0.0
    %767 = vmatprep.mubr.f32.mxu0 0.0
    %768 = vmatmul.mubr.f32.gmra.mrb[0].mxu0 %v701
    %v769 = vpop.f32.mrb[0].mxu0
    %v770 = vadd.f32 %v699, %v769
    %v771 = vpop.f32.mrb[0].mxu0
    %772 = vdwg.mxu0
    %v773 = vmax.f32 %v770, 0.0
    %v774 = vld [vmem:[%s9] sm:$0xff]
    %v775 = vld [vmem:[%s9 + $0x8] sm:$0xff]
    %v776 = vld [vmem:[%s9 + $0x10] sm:$0xff]
    %v777 = vld [vmem:[%s9 + $0x18] sm:$0xff]
    %v778 = vld [vmem:[%s9 + $0x20] sm:$0x1]
    %v779 = vlaneseq
    %v780 = vshrl.u32 %v779, 7
    %v781 = vsub.s32 0, %v780
    %v782 = vrot.slane %v778, %v781
    %v784 = vsel %vm99, %v773, 0
    %786 = vmatprep.subr.mxu0 0.0
    %787 = vmatpush1.msra.mxu0 %v774
    %788 = vmatprep.subr.mxu0 0.0
    %789 = vmatpush1.msra.mxu0 %v775
    %790 = vmatprep.subr.mxu0 0.0
    %791 = vmatpush1.msra.mxu0 %v776
    %792 = vmatprep.subr.mxu0 0.0
    %793 = vmatpush1.msra.mxu0 %v777
    %794 = vmatprep.subr.mxu0 0.0
    %795 = vmatpush1.msra.mxu0 0.0
    %796 = vmatprep.subr.mxu0 0.0
    %797 = vmatpush1.msra.mxu0 0.0
    %798 = vmatprep.subr.mxu0 0.0
    %799 = vmatpush1.msra.mxu0 0.0
    %800 = vmatprep.subr.mxu0 0.0
    %801 = vmatpush1.msra.mxu0 0.0
    %802 = vmatprep.subr.mxu0 0.0
    %803 = vmatpush1.msra.mxu0 0.0
    %804 = vmatprep.subr.mxu0 0.0
    %805 = vmatpush1.msra.mxu0 0.0
    %806 = vmatprep.subr.mxu0 0.0
    %807 = vmatpush1.msra.mxu0 0.0
    %808 = vmatprep.subr.mxu0 0.0
    %809 = vmatpush1.msra.mxu0 0.0
    %810 = vmatprep.subr.mxu0 0.0
    %811 = vmatpush1.msra.mxu0 0.0
    %812 = vmatprep.subr.mxu0 0.0
    %813 = vmatpush1.msra.mxu0 0.0
    %814 = vmatprep.subr.mxu0 0.0
    %815 = vmatpush1.msra.mxu0 0.0
    %816 = vmatprep.subr.mxu0 0.0
    %817 = vmatpush1.msra.mxu0 0.0
    %818 = vmatprep.subr.mxu0 0.0
    %819 = vmatpush1.msra.mxu0 0.0
    %820 = vmatprep.subr.mxu0 0.0
    %821 = vmatpush1.msra.mxu0 0.0
    %822 = vmatprep.subr.mxu0 0.0
    %823 = vmatpush1.msra.mxu0 0.0
    %824 = vmatprep.subr.mxu0 0.0
    %825 = vmatpush1.msra.mxu0 0.0
    %826 = vmatprep.subr.mxu0 0.0
    %827 = vmatpush1.msra.mxu0 0.0
    %828 = vmatprep.subr.mxu0 0.0
    %829 = vmatpush1.msra.mxu0 0.0
    %830 = vmatprep.subr.mxu0 0.0
    %831 = vmatpush1.msra.mxu0 0.0
    %832 = vmatprep.subr.mxu0 0.0
    %833 = vmatpush1.msra.mxu0 0.0
    %834 = vmatprep.subr.mxu0 0.0
    %835 = vmatpush1.msra.mxu0 0.0
    %836 = vmatprep.subr.mxu0 0.0
    %837 = vmatpush1.msra.mxu0 0.0
    %838 = vmatprep.subr.mxu0 0.0
    %839 = vmatpush1.msra.mxu0 0.0
    %840 = vmatprep.subr.mxu0 0.0
    %841 = vmatpush1.msra.mxu0 0.0
    %842 = vmatprep.subr.mxu0 0.0
    %843 = vmatpush1.msra.mxu0 0.0
    %844 = vmatprep.subr.mxu0 0.0
    %845 = vmatpush1.msra.mxu0 0.0
    %846 = vmatprep.subr.mxu0 0.0
    %847 = vmatpush1.msra.mxu0 0.0
    %848 = vmatprep.subr.mxu0 0.0
    %849 = vmatpush1.msra.mxu0 0.0
    %850 = vmatprep.mubr.f32.mxu0 0.0
    %851 = vmatmul.mubr.f32.gmra.mrb[0].mxu0 %v784
    %v852 = vpop.f32.mrb[0].mxu0
    %v853 = vadd.f32 %v782, %v852
    %v854 = vpop.f32.mrb[0].mxu0
    %855 = vdwg.mxu0
    %v856 = vxor.u32 %v853, 2147483648
    %v857 = vmul.f32 %v856, 1.442695
    %v858 = vpow.pop %v857
    %v859 = vadd.f32 %v858, 1.0
    %v860 = vrcp.pop %v859
    %v861 = vmul.f32 1.0, %v860
    %vm862 = vcmask 1024
    %863 = vst.msk [vmem:[%s13] sm:$0x3] %vm862, %v861
    %v864 = vld [vmem:[#allocation3] sm:$0xff]
    %v865 = vld [vmem:[#allocation3 + $0x8] sm:$0xff]
    %v866 = vld [vmem:[%s2] sm:$0x3]
    loop: start=0, step=1, limit=8
    $region65: #{nao_forward.1} parent=1 // loop_pre_header
      _
    $region66: #{nao_forward.1} parent=1 // loop_header
      %s869 = sphi 0, %s873
      %p870 = scmp.ge.s32.totalorder %s869, 8
      %v874 = vphi %v604, %v982
      %v875 = vphi %v616, %v1157
    $region67: #{nao_forward.1} parent=1 // loop_header_branch
      %872 = sbr.rel (%p870) target = $region71
    $region68: #{nao_forward.1} parent=1 // loop_body
      %s876 = smul.u32 %s869, 2
      %s877 = scalar_lea.vmem [#allocation4], %s876
      %v878 = vld [vmem:[%s877] sm:$0x3]
      %880 = vrot.lane.b32.xlu0 %v874, 32
      %v881 = vpop.permute.xlu0 %880
      %v882 = vsel %vm99, %v881, 0
      %884 = vmatprep.subr.mxu0 0.0
      %885 = vmatpush1.msra.mxu0 %v75
      %886 = vmatprep.subr.mxu0 0.0
      %887 = vmatpush1.msra.mxu0 %v76
      %888 = vmatprep.subr.mxu0 0.0
      %889 = vmatpush1.msra.mxu0 %v77
      %890 = vmatprep.subr.mxu0 0.0
      %891 = vmatpush1.msra.mxu0 %v78
      %892 = vmatprep.subr.mxu0 0.0
      %893 = vmatpush1.msra.mxu0 0.0
      %894 = vmatprep.subr.mxu0 0.0
      %895 = vmatpush1.msra.mxu0 0.0
      %896 = vmatprep.subr.mxu0 0.0
      %897 = vmatpush1.msra.mxu0 0.0
      %898 = vmatprep.subr.mxu0 0.0
      %899 = vmatpush1.msra.mxu0 0.0
      %900 = vmatprep.subr.mxu0 0.0
      %901 = vmatpush1.msra.mxu0 0.0
      %902 = vmatprep.subr.mxu0 0.0
      %903 = vmatpush1.msra.mxu0 0.0
      %904 = vmatprep.subr.mxu0 0.0
      %905 = vmatpush1.msra.mxu0 0.0
      %906 = vmatprep.subr.mxu0 0.0
      %907 = vmatpush1.msra.mxu0 0.0
      %908 = vmatprep.subr.mxu0 0.0
      %909 = vmatpush1.msra.mxu0 0.0
      %910 = vmatprep.subr.mxu0 0.0
      %911 = vmatpush1.msra.mxu0 0.0
      %912 = vmatprep.subr.mxu0 0.0
      %913 = vmatpush1.msra.mxu0 0.0
      %914 = vmatprep.subr.mxu0 0.0
      %915 = vmatpush1.msra.mxu0 0.0
      %916 = vmatprep.subr.mxu0 0.0
      %917 = vmatpush1.msra.mxu0 0.0
      %918 = vmatprep.subr.mxu0 0.0
      %919 = vmatpush1.msra.mxu0 0.0
      %920 = vmatprep.subr.mxu0 0.0
      %921 = vmatpush1.msra.mxu0 0.0
      %922 = vmatprep.subr.mxu0 0.0
      %923 = vmatpush1.msra.mxu0 0.0
      %924 = vmatprep.subr.mxu0 0.0
      %925 = vmatpush1.msra.mxu0 0.0
      %926 = vmatprep.subr.mxu0 0.0
      %927 = vmatpush1.msra.mxu0 0.0
      %928 = vmatprep.subr.mxu0 0.0
      %929 = vmatpush1.msra.mxu0 0.0
      %930 = vmatprep.subr.mxu0 0.0
      %931 = vmatpush1.msra.mxu0 0.0
      %932 = vmatprep.subr.mxu0 0.0
      %933 = vmatpush1.msra.mxu0 0.0
      %934 = vmatprep.subr.mxu0 0.0
      %935 = vmatpush1.msra.mxu0 0.0
      %936 = vmatprep.subr.mxu0 0.0
      %937 = vmatpush1.msra.mxu0 0.0
      %938 = vmatprep.subr.mxu0 0.0
      %939 = vmatpush1.msra.mxu0 0.0
      %940 = vmatprep.subr.mxu0 0.0
      %941 = vmatpush1.msra.mxu0 0.0
      %942 = vmatprep.subr.mxu0 0.0
      %943 = vmatpush1.msra.mxu0 0.0
      %944 = vmatprep.subr.mxu0 0.0
      %945 = vmatpush1.msra.mxu0 0.0
      %946 = vmatprep.subr.mxu0 0.0
      %947 = vmatpush1.msra.mxu0 0.0
      %948 = vmatprep.mubr.f32.mxu0 0.0
      %949 = vmatmul.mubr.f32.gmra.mrb[0].mxu0 %v882
      %v950 = vpop.f32.mrb[0].mxu0
      %v951 = vadd.f32 0.0, %v950
      %v952 = vpop.f32.mrb[0].mxu0
      %953 = vdwg.mxu0
      %v954 = vadd.f32 %v878, %v951
      %v955 = vxor.u32 %v954, 2147483648
      %v956 = vmul.f32 %v955, 1.442695
      %v957 = vpow.pop %v956
      %v958 = vadd.f32 %v957, 1.0
      %v959 = vrcp.pop %v958
      %v960 = vmul.f32 1.0, %v959
      %v961 = vtanh.pop %v954
      %963 = vrot.lane.b32.xlu0 %v875, 32
      %v964 = vpop.permute.xlu0 %963
      %v966 = vmul.f32 %v960, %v964
      %968 = vrot.lane.b32.xlu0 %v961, 64
      %v969 = vpop.permute.xlu0 %968
      %v971 = vmul.f32 %v960, %v969
      %973 = vrot.lane.b32.xlu0 %v971, 32
      %v974 = vpop.permute.xlu0 %973
      %v976 = vadd.f32 %v966, %v974
      %v977 = vtanh.pop %v976
      %979 = vrot.lane.b32.xlu0 %v977, 64
      %v980 = vpop.permute.xlu0 %979
      %v982 = vmul.f32 %v960, %v980
      %984 = vrot.lane.b32.xlu0 %v982, 32
      %v985 = vpop.permute.xlu0 %984
      %v986 = vsel %vm99, %v985, 0
      %v989 = vsel %vm99, %v864, 0
      %v992 = vsel %vm99, %v865, 0
      %994 = vmatprep.subr.mxu0 0.0
      %995 = vmatpush1.xpose.msra.mxu0 %v989
      %996 = vmatprep.subr.mxu0 0.0
      %997 = vmatpush1.xpose.msra.mxu0 %v992
      %998 = vmatprep.subr.mxu0 0.0
      %999 = vmatpush1.xpose.msra.mxu0 0.0
      %1000 = vmatprep.subr.mxu0 0.0
      %1001 = vmatpush1.xpose.msra.mxu0 0.0
      %1002 = vmatprep.subr.mxu0 0.0
      %1003 = vmatpush1.xpose.msra.mxu0 0.0
      %1004 = vmatprep.subr.mxu0 0.0
      %1005 = vmatpush1.xpose.msra.mxu0 0.0
      %1006 = vmatprep.subr.mxu0 0.0
      %1007 = vmatpush1.xpose.msra.mxu0 0.0
      %1008 = vmatprep.subr.mxu0 0.0
      %1009 = vmatpush1.xpose.msra.mxu0 0.0
      %1010 = vmatprep.subr.mxu0 0.0
      %1011 = vmatpush1.xpose.msra.mxu0 0.0
      %1012 = vmatprep.subr.mxu0 0.0
      %1013 = vmatpush1.xpose.msra.mxu0 0.0
      %1014 = vmatprep.subr.mxu0 0.0
      %1015 = vmatpush1.xpose.msra.mxu0 0.0
      %1016 = vmatprep.subr.mxu0 0.0
      %1017 = vmatpush1.xpose.msra.mxu0 0.0
      %1018 = vmatprep.subr.mxu0 0.0
      %1019 = vmatpush1.xpose.msra.mxu0 0.0
      %1020 = vmatprep.subr.mxu0 0.0
      %1021 = vmatpush1.xpose.msra.mxu0 0.0
      %1022 = vmatprep.subr.mxu0 0.0
      %1023 = vmatpush1.xpose.msra.mxu0 0.0
      %1024 = vmatprep.subr.mxu0 0.0
      %1025 = vmatpush1.xpose.msra.mxu0 0.0
      %1026 = vmatprep.subr.mxu0 0.0
      %1027 = vmatpush1.xpose.msra.mxu0 0.0
      %1028 = vmatprep.subr.mxu0 0.0
      %1029 = vmatpush1.xpose.msra.mxu0 0.0
      %1030 = vmatprep.subr.mxu0 0.0
      %1031 = vmatpush1.xpose.msra.mxu0 0.0
      %1032 = vmatprep.subr.mxu0 0.0
      %1033 = vmatpush1.xpose.msra.mxu0 0.0
      %1034 = vmatprep.subr.mxu0 0.0
      %1035 = vmatpush1.xpose.msra.mxu0 0.0
      %1036 = vmatprep.subr.mxu0 0.0
      %1037 = vmatpush1.xpose.msra.mxu0 0.0
      %1038 = vmatprep.subr.mxu0 0.0
      %1039 = vmatpush1.xpose.msra.mxu0 0.0
      %1040 = vmatprep.subr.mxu0 0.0
      %1041 = vmatpush1.xpose.msra.mxu0 0.0
      %1042 = vmatprep.subr.mxu0 0.0
      %1043 = vmatpush1.xpose.msra.mxu0 0.0
      %1044 = vmatprep.subr.mxu0 0.0
      %1045 = vmatpush1.xpose.msra.mxu0 0.0
      %1046 = vmatprep.subr.mxu0 0.0
      %1047 = vmatpush1.xpose.msra.mxu0 0.0
      %1048 = vmatprep.subr.mxu0 0.0
      %1049 = vmatpush1.xpose.msra.mxu0 0.0
      %1050 = vmatprep.subr.mxu0 0.0
      %1051 = vmatpush1.xpose.msra.mxu0 0.0
      %1052 = vmatprep.subr.mxu0 0.0
      %1053 = vmatpush1.xpose.msra.mxu0 0.0
      %1054 = vmatprep.subr.mxu0 0.0
      %1055 = vmatpush1.xpose.msra.mxu0 0.0
      %1056 = vmatprep.subr.mxu0 0.0
      %1057 = vmatpush1.xpose.msra.mxu0 0.0
      %1058 = vmatprep.mubr.f32.mxu0 0.0
      %1059 = vmatmul.mubr.f32.gmra.mrb[0].mxu0 %v986
      %v1060 = vpop.f32.mrb[0].mxu0
      %v1061 = vadd.f32 %v866, %v1060
      %v1062 = vpop.f32.mrb[0].mxu0
      %1063 = vdwg.mxu0
      %vm1064 = vcmask 123904
      %v1065 = vsel %vm1064, %v1061, -inf
      %1066 = vmax.xlane.f32.xlu0 %v1065
      %v1067 = vpop.xlane.xlu0 %1066
      %v1068 = vsub.f32 %v1061, %v1067
      %v1069 = vmul.f32 %v1068, 1.442695
      %v1070 = vpow.pop %v1069
      %v1071 = vsel %vm1064, %v1070, 0.0
      %1072 = vadd.xlane.f32.xlu0 %v1071
      %v1073 = vpop.xlane.xlu0 %1072
      %v1074 = vrcp.pop %v1073
      %v1075 = vmul.f32 %v1070, %v1074
      %vm1076 = vcmask 130048
      %v1078 = vsel %vm1076, %v1075, 0
      %1080 = vmatprep.subr.mxu0 0.0
      %1081 = vmatpush1.msra.mxu0 %v864
      %1082 = vmatprep.subr.mxu0 0.0
      %1083 = vmatpush1.msra.mxu0 %v865
      %1084 = vmatprep.subr.mxu0 0.0
      %1085 = vmatpush1.msra.mxu0 0.0
      %1086 = vmatprep.subr.mxu0 0.0
      %1087 = vmatpush1.msra.mxu0 0.0
      %1088 = vmatprep.subr.mxu0 0.0
      %1089 = vmatpush1.msra.mxu0 0.0
      %1090 = vmatprep.subr.mxu0 0.0
      %1091 = vmatpush1.msra.mxu0 0.0
      %1092 = vmatprep.subr.mxu0 0.0
      %1093 = vmatpush1.msra.mxu0 0.0
      %1094 = vmatprep.subr.mxu0 0.0
      %1095 = vmatpush1.msra.mxu0 0.0
      %1096 = vmatprep.subr.mxu0 0.0
      %1097 = vmatpush1.msra.mxu0 0.0
      %1098 = vmatprep.subr.mxu0 0.0
      %1099 = vmatpush1.msra.mxu0 0.0
      %1100 = vmatprep.subr.mxu0 0.0
      %1101 = vmatpush1.msra.mxu0 0.0
      %1102 = vmatprep.subr.mxu0 0.0
      %1103 = vmatpush1.msra.mxu0 0.0
      %1104 = vmatprep.subr.mxu0 0.0
      %1105 = vmatpush1.msra.mxu0 0.0
      %1106 = vmatprep.subr.mxu0 0.0
      %1107 = vmatpush1.msra.mxu0 0.0
      %1108 = vmatprep.subr.mxu0 0.0
      %1109 = vmatpush1.msra.mxu0 0.0
      %1110 = vmatprep.subr.mxu0 0.0
      %1111 = vmatpush1.msra.mxu0 0.0
      %1112 = vmatprep.subr.mxu0 0.0
      %1113 = vmatpush1.msra.mxu0 0.0
      %1114 = vmatprep.subr.mxu0 0.0
      %1115 = vmatpush1.msra.mxu0 0.0
      %1116 = vmatprep.subr.mxu0 0.0
      %1117 = vmatpush1.msra.mxu0 0.0
      %1118 = vmatprep.subr.mxu0 0.0
      %1119 = vmatpush1.msra.mxu0 0.0
      %1120 = vmatprep.subr.mxu0 0.0
      %1121 = vmatpush1.msra.mxu0 0.0
      %1122 = vmatprep.subr.mxu0 0.0
      %1123 = vmatpush1.msra.mxu0 0.0
      %1124 = vmatprep.subr.mxu0 0.0
      %1125 = vmatpush1.msra.mxu0 0.0
      %1126 = vmatprep.subr.mxu0 0.0
      %1127 = vmatpush1.msra.mxu0 0.0
      %1128 = vmatprep.subr.mxu0 0.0
      %1129 = vmatpush1.msra.mxu0 0.0
      %1130 = vmatprep.subr.mxu0 0.0
      %1131 = vmatpush1.msra.mxu0 0.0
      %1132 = vmatprep.subr.mxu0 0.0
      %1133 = vmatpush1.msra.mxu0 0.0
      %1134 = vmatprep.subr.mxu0 0.0
      %1135 = vmatpush1.msra.mxu0 0.0
      %1136 = vmatprep.subr.mxu0 0.0
      %1137 = vmatpush1.msra.mxu0 0.0
      %1138 = vmatprep.subr.mxu0 0.0
      %1139 = vmatpush1.msra.mxu0 0.0
      %1140 = vmatprep.subr.mxu0 0.0
      %1141 = vmatpush1.msra.mxu0 0.0
      %1142 = vmatprep.subr.mxu0 0.0
      %1143 = vmatpush1.msra.mxu0 0.0
      %1144 = vmatprep.mubr.f32.mxu0 0.0
      %1145 = vmatmul.mubr.f32.gmra.mrb[0].mxu0 %v1078
      %v1146 = vpop.f32.mrb[0].mxu0
      %v1147 = vadd.f32 0.0, %v1146
      %v1148 = vpop.f32.mrb[0].mxu0
      %1149 = vdwg.mxu0
      %s1151 = scalar_lea.vmem [#allocation5], %s876
      %1152 = vst.msk [vmem:[%s1151] sm:$0x3] %vm598, %v985
      %s1153 = scalar_lea.vmem [#allocation6], %s876
      %1154 = vst.msk [vmem:[%s1153] sm:$0x3] %vm598, %v1147
      %1156 = vrot.lane.b32.xlu0 %v976, 96
      %v1157 = vpop.permute.xlu0 %1156
    $region69: #{nao_forward.1} parent=1 // loop_footer
      %s873 = sadd.s32 1, %s869
    $region70: #{nao_forward.1} parent=1 // loop_footer_branch
      %868 = sbr.rel target = $region66
    $region71: #{nao_forward.1} parent=1 // loop_exit
      _
    %v1159 = vld [vmem:[#allocation5] sm:$0xff]
    %v1160 = vld [vmem:[#allocation5 + $0x8] sm:$0xff]
    %v1161 = vld [vmem:[#allocation6] sm:$0xff]
    %v1162 = vld [vmem:[#allocation6 + $0x8] sm:$0xff]
    %v1163 = vld [vmem:[%s10] sm:$0xff]
    %v1164 = vld [vmem:[%s10 + $0x8] sm:$0xff]
    %v1165 = vld [vmem:[%s10 + $0x10] sm:$0xff]
    %v1166 = vld [vmem:[%s10 + $0x18] sm:$0xff]
    %v1167 = vld [vmem:[%s10 + $0x20] sm:$0xff]
    %v1168 = vld [vmem:[%s10 + $0x28] sm:$0xff]
    %v1169 = vld [vmem:[%s10 + $0x30] sm:$0xff]
    %v1170 = vld [vmem:[%s10 + $0x38] sm:$0xff]
    %v1171 = vld [vmem:[%s10 + $0x40] sm:$0x1]
    %v1173 = vsel %vm99, %v1159, 0
    %v1176 = vsel %vm99, %v1160, 0
    %1178 = vmatprep.subr.mxu0 0.0
    %1179 = vmatpush1.msra.mxu0 %v1167
    %1180 = vmatprep.subr.mxu0 0.0
    %1181 = vmatpush1.msra.mxu0 %v1168
    %1182 = vmatprep.subr.mxu0 0.0
    %1183 = vmatpush1.msra.mxu0 %v1169
    %1184 = vmatprep.subr.mxu0 0.0
    %1185 = vmatpush1.msra.mxu0 %v1170
    %1186 = vmatprep.subr.mxu0 0.0
    %1187 = vmatpush1.msra.mxu0 0.0
    %1188 = vmatprep.subr.mxu0 0.0
    %1189 = vmatpush1.msra.mxu0 0.0
    %1190 = vmatprep.subr.mxu0 0.0
    %1191 = vmatpush1.msra.mxu0 0.0
    %1192 = vmatprep.subr.mxu0 0.0
    %1193 = vmatpush1.msra.mxu0 0.0
    %1194 = vmatprep.subr.mxu0 0.0
    %1195 = vmatpush1.msra.mxu0 0.0
    %1196 = vmatprep.subr.mxu0 0.0
    %1197 = vmatpush1.msra.mxu0 0.0
    %1198 = vmatprep.subr.mxu0 0.0
    %1199 = vmatpush1.msra.mxu0 0.0
    %1200 = vmatprep.subr.mxu0 0.0
    %1201 = vmatpush1.msra.mxu0 0.0
    %1202 = vmatprep.subr.mxu0 0.0
    %1203 = vmatpush1.msra.mxu0 0.0
    %1204 = vmatprep.subr.mxu0 0.0
    %1205 = vmatpush1.msra.mxu0 0.0
    %1206 = vmatprep.subr.mxu0 0.0
    %1207 = vmatpush1.msra.mxu0 0.0
    %1208 = vmatprep.subr.mxu0 0.0
    %1209 = vmatpush1.msra.mxu0 0.0
    %1210 = vmatprep.subr.mxu0 0.0
    %1211 = vmatpush1.msra.mxu0 0.0
    %1212 = vmatprep.subr.mxu0 0.0
    %1213 = vmatpush1.msra.mxu0 0.0
    %1214 = vmatprep.subr.mxu0 0.0
    %1215 = vmatpush1.msra.mxu0 0.0
    %1216 = vmatprep.subr.mxu0 0.0
    %1217 = vmatpush1.msra.mxu0 0.0
    %1218 = vmatprep.subr.mxu0 0.0
    %1219 = vmatpush1.msra.mxu0 0.0
    %1220 = vmatprep.subr.mxu0 0.0
    %1221 = vmatpush1.msra.mxu0 0.0
    %1222 = vmatprep.subr.mxu0 0.0
    %1223 = vmatpush1.msra.mxu0 0.0
    %1224 = vmatprep.subr.mxu0 0.0
    %1225 = vmatpush1.msra.mxu0 0.0
    %1226 = vmatprep.subr.mxu0 0.0
    %1227 = vmatpush1.msra.mxu0 0.0
    %1228 = vmatprep.subr.mxu0 0.0
    %1229 = vmatpush1.msra.mxu0 0.0
    %1230 = vmatprep.subr.mxu0 0.0
    %1231 = vmatpush1.msra.mxu0 0.0
    %1232 = vmatprep.subr.mxu0 0.0
    %1233 = vmatpush1.msra.mxu0 0.0
    %1234 = vmatprep.subr.mxu0 0.0
    %1235 = vmatpush1.msra.mxu0 0.0
    %1236 = vmatprep.subr.mxu0 0.0
    %1237 = vmatpush1.msra.mxu0 0.0
    %1238 = vmatprep.subr.mxu0 0.0
    %1239 = vmatpush1.msra.mxu0 0.0
    %1240 = vmatprep.subr.mxu0 0.0
    %1241 = vmatpush1.msra.mxu0 0.0
    %1242 = vmatprep.mubr.f32.mxu0 0.0
    %1243 = vmatmul.mubr.f32.gmra.mrb[0].mxu0 %v1173
    %v1244 = vpop.f32.mrb[0].mxu0
    %v1245 = vadd.f32 0.0, %v1244
    %v1246 = vpop.f32.mrb[0].mxu0
    %1247 = vmatprep.mubr.f32.mxu0 0.0
    %1248 = vmatmul.mubr.f32.gmra.mrb[0].mxu0 %v1176
    %v1249 = vpop.f32.mrb[0].mxu0
    %v1250 = vadd.f32 0.0, %v1249
    %v1251 = vpop.f32.mrb[0].mxu0
    %1252 = vdwg.mxu0
    %v1254 = vsel %vm99, %v1161, 0
    %v1257 = vsel %vm99, %v1162, 0
    %1259 = vmatprep.subr.mxu0 0.0
    %1260 = vmatpush1.msra.mxu0 %v1163
    %1261 = vmatprep.subr.mxu0 0.0
    %1262 = vmatpush1.msra.mxu0 %v1164
    %1263 = vmatprep.subr.mxu0 0.0
    %1264 = vmatpush1.msra.mxu0 %v1165
    %1265 = vmatprep.subr.mxu0 0.0
    %1266 = vmatpush1.msra.mxu0 %v1166
    %1267 = vmatprep.subr.mxu0 0.0
    %1268 = vmatpush1.msra.mxu0 0.0
    %1269 = vmatprep.subr.mxu0 0.0
    %1270 = vmatpush1.msra.mxu0 0.0
    %1271 = vmatprep.subr.mxu0 0.0
    %1272 = vmatpush1.msra.mxu0 0.0
    %1273 = vmatprep.subr.mxu0 0.0
    %1274 = vmatpush1.msra.mxu0 0.0
    %1275 = vmatprep.subr.mxu0 0.0
    %1276 = vmatpush1.msra.mxu0 0.0
    %1277 = vmatprep.subr.mxu0 0.0
    %1278 = vmatpush1.msra.mxu0 0.0
    %1279 = vmatprep.subr.mxu0 0.0
    %1280 = vmatpush1.msra.mxu0 0.0
    %1281 = vmatprep.subr.mxu0 0.0
    %1282 = vmatpush1.msra.mxu0 0.0
    %1283 = vmatprep.subr.mxu0 0.0
    %1284 = vmatpush1.msra.mxu0 0.0
    %1285 = vmatprep.subr.mxu0 0.0
    %1286 = vmatpush1.msra.mxu0 0.0
    %1287 = vmatprep.subr.mxu0 0.0
    %1288 = vmatpush1.msra.mxu0 0.0
    %1289 = vmatprep.subr.mxu0 0.0
    %1290 = vmatpush1.msra.mxu0 0.0
    %1291 = vmatprep.subr.mxu0 0.0
    %1292 = vmatpush1.msra.mxu0 0.0
    %1293 = vmatprep.subr.mxu0 0.0
    %1294 = vmatpush1.msra.mxu0 0.0
    %1295 = vmatprep.subr.mxu0 0.0
    %1296 = vmatpush1.msra.mxu0 0.0
    %1297 = vmatprep.subr.mxu0 0.0
    %1298 = vmatpush1.msra.mxu0 0.0
    %1299 = vmatprep.subr.mxu0 0.0
    %1300 = vmatpush1.msra.mxu0 0.0
    %1301 = vmatprep.subr.mxu0 0.0
    %1302 = vmatpush1.msra.mxu0 0.0
    %1303 = vmatprep.subr.mxu0 0.0
    %1304 = vmatpush1.msra.mxu0 0.0
    %1305 = vmatprep.subr.mxu0 0.0
    %1306 = vmatpush1.msra.mxu0 0.0
    %1307 = vmatprep.subr.mxu0 0.0
    %1308 = vmatpush1.msra.mxu0 0.0
    %1309 = vmatprep.subr.mxu0 0.0
    %1310 = vmatpush1.msra.mxu0 0.0
    %1311 = vmatprep.subr.mxu0 0.0
    %1312 = vmatpush1.msra.mxu0 0.0
    %1313 = vmatprep.subr.mxu0 0.0
    %1314 = vmatpush1.msra.mxu0 0.0
    %1315 = vmatprep.subr.mxu0 0.0
    %1316 = vmatpush1.msra.mxu0 0.0
    %1317 = vmatprep.subr.mxu0 0.0
    %1318 = vmatpush1.msra.mxu0 0.0
    %1319 = vmatprep.subr.mxu0 0.0
    %1320 = vmatpush1.msra.mxu0 0.0
    %1321 = vmatprep.subr.mxu0 0.0
    %1322 = vmatpush1.msra.mxu0 0.0
    %1323 = vmatprep.mubr.f32.mxu0 0.0
    %1324 = vmatmul.mubr.f32.gmra.mrb[0].mxu0 %v1254
    %v1325 = vpop.f32.mrb[0].mxu0
    %v1326 = vadd.f32 %v1245, %v1325
    %v1327 = vpop.f32.mrb[0].mxu0
    %1328 = vmatprep.mubr.f32.mxu0 0.0
    %1329 = vmatmul.mubr.f32.gmra.mrb[0].mxu0 %v1257
    %v1330 = vpop.f32.mrb[0].mxu0
    %v1331 = vadd.f32 %v1250, %v1330
    %v1332 = vpop.f32.mrb[0].mxu0
    %1333 = vdwg.mxu0
    %v1334 = vlaneseq
    %v1335 = vshrl.u32 %v1334, 7
    %v1336 = vsub.s32 0, %v1335
    %v1337 = vrot.slane %v1171, %v1336
    %v1338 = vadd.f32 %v1326, %v1337
    %v1339 = vadd.f32 %v1331, %v1337
    %v1340 = vtanh.pop %v1338
    %v1341 = vtanh.pop %v1339
    %v1342 = vld [vmem:[%s3] sm:$0xff]
    %v1343 = vld [vmem:[%s3 + $0x8] sm:$0xff]
    %vm1344 = vcmask 130048
    %v1346 = vsel %vm1344, %v1342, 0
    %v1349 = vsel %vm1344, %v1343, 0
    %1351 = vmatprep.subr.mxu0 0.0
    %1352 = vmatpush1.msra.mxu0 %v1340
    %1353 = vmatprep.subr.mxu0 0.0
    %1354 = vmatpush1.msra.mxu0 %v1341
    %1355 = vmatprep.subr.mxu0 0.0
    %1356 = vmatpush1.msra.mxu0 0.0
    %1357 = vmatprep.subr.mxu0 0.0
    %1358 = vmatpush1.msra.mxu0 0.0
    %1359 = vmatprep.subr.mxu0 0.0
    %1360 = vmatpush1.msra.mxu0 0.0
    %1361 = vmatprep.subr.mxu0 0.0
    %1362 = vmatpush1.msra.mxu0 0.0
    %1363 = vmatprep.subr.mxu0 0.0
    %1364 = vmatpush1.msra.mxu0 0.0
    %1365 = vmatprep.subr.mxu0 0.0
    %1366 = vmatpush1.msra.mxu0 0.0
    %1367 = vmatprep.subr.mxu0 0.0
    %1368 = vmatpush1.msra.mxu0 0.0
    %1369 = vmatprep.subr.mxu0 0.0
    %1370 = vmatpush1.msra.mxu0 0.0
    %1371 = vmatprep.subr.mxu0 0.0
    %1372 = vmatpush1.msra.mxu0 0.0
    %1373 = vmatprep.subr.mxu0 0.0
    %1374 = vmatpush1.msra.mxu0 0.0
    %1375 = vmatprep.subr.mxu0 0.0
    %1376 = vmatpush1.msra.mxu0 0.0
    %1377 = vmatprep.subr.mxu0 0.0
    %1378 = vmatpush1.msra.mxu0 0.0
    %1379 = vmatprep.subr.mxu0 0.0
    %1380 = vmatpush1.msra.mxu0 0.0
    %1381 = vmatprep.subr.mxu0 0.0
    %1382 = vmatpush1.msra.mxu0 0.0
    %1383 = vmatprep.subr.mxu0 0.0
    %1384 = vmatpush1.msra.mxu0 0.0
    %1385 = vmatprep.subr.mxu0 0.0
    %1386 = vmatpush1.msra.mxu0 0.0
    %1387 = vmatprep.subr.mxu0 0.0
    %1388 = vmatpush1.msra.mxu0 0.0
    %1389 = vmatprep.subr.mxu0 0.0
    %1390 = vmatpush1.msra.mxu0 0.0
    %1391 = vmatprep.subr.mxu0 0.0
    %1392 = vmatpush1.msra.mxu0 0.0
    %1393 = vmatprep.subr.mxu0 0.0
    %1394 = vmatpush1.msra.mxu0 0.0
    %1395 = vmatprep.subr.mxu0 0.0
    %1396 = vmatpush1.msra.mxu0 0.0
    %1397 = vmatprep.subr.mxu0 0.0
    %1398 = vmatpush1.msra.mxu0 0.0
    %1399 = vmatprep.subr.mxu0 0.0
    %1400 = vmatpush1.msra.mxu0 0.0
    %1401 = vmatprep.subr.mxu0 0.0
    %1402 = vmatpush1.msra.mxu0 0.0
    %1403 = vmatprep.subr.mxu0 0.0
    %1404 = vmatpush1.msra.mxu0 0.0
    %1405 = vmatprep.subr.mxu0 0.0
    %1406 = vmatpush1.msra.mxu0 0.0
    %1407 = vmatprep.subr.mxu0 0.0
    %1408 = vmatpush1.msra.mxu0 0.0
    %1409 = vmatprep.subr.mxu0 0.0
    %1410 = vmatpush1.msra.mxu0 0.0
    %1411 = vmatprep.subr.mxu0 0.0
    %1412 = vmatpush1.msra.mxu0 0.0
    %1413 = vmatprep.subr.mxu0 0.0
    %1414 = vmatpush1.msra.mxu0 0.0
    %1415 = vmatprep.mubr.f32.mxu0 0.0
    %1416 = vmatmul.mubr.f32.gmra.mrb[0].mxu0 %v1346
    %v1417 = vpop.f32.mrb[0].mxu0
    %v1418 = vadd.f32 0.0, %v1417
    %v1419 = vpop.f32.mrb[0].mxu0
    %1420 = vmatprep.mubr.f32.mxu0 0.0
    %1421 = vmatmul.mubr.f32.gmra.mrb[0].mxu0 %v1349
    %v1422 = vpop.f32.mrb[0].mxu0
    %v1423 = vadd.f32 0.0, %v1422
    %v1424 = vpop.f32.mrb[0].mxu0
    %1425 = vdwg.mxu0
    %v1426 = vld [vmem:[%s11] sm:$0xff]
    %v1427 = vld [vmem:[%s11 + $0x8] sm:$0xff]
    %v1428 = vld [vmem:[%s11 + $0x10] sm:$0xff]
    %v1429 = vld [vmem:[%s11 + $0x18] sm:$0xff]
    %v1430 = vld [vmem:[%s12] sm:$0x1]
    %v1432 = vlaneseq
    %v1433 = vshrl.u32 %v1432, 7
    %v1434 = vsub.s32 0, %v1433
    %v1435 = vrot.slane %v1430, %v1434
    %v1438 = vsel %vm99, %v1418, 0
    %v1441 = vsel %vm99, %v1423, 0
    %1443 = vmatprep.subr.mxu0 0.0
    %1444 = vmatpush1.msra.mxu0 %v1426
    %1445 = vmatprep.subr.mxu0 0.0
    %1446 = vmatpush1.msra.mxu0 %v1427
    %1447 = vmatprep.subr.mxu0 0.0
    %1448 = vmatpush1.msra.mxu0 %v1428
    %1449 = vmatprep.subr.mxu0 0.0
    %1450 = vmatpush1.msra.mxu0 %v1429
    %1451 = vmatprep.subr.mxu0 0.0
    %1452 = vmatpush1.msra.mxu0 0.0
    %1453 = vmatprep.subr.mxu0 0.0
    %1454 = vmatpush1.msra.mxu0 0.0
    %1455 = vmatprep.subr.mxu0 0.0
    %1456 = vmatpush1.msra.mxu0 0.0
    %1457 = vmatprep.subr.mxu0 0.0
    %1458 = vmatpush1.msra.mxu0 0.0
    %1459 = vmatprep.subr.mxu0 0.0
    %1460 = vmatpush1.msra.mxu0 0.0
    %1461 = vmatprep.subr.mxu0 0.0
    %1462 = vmatpush1.msra.mxu0 0.0
    %1463 = vmatprep.subr.mxu0 0.0
    %1464 = vmatpush1.msra.mxu0 0.0
    %1465 = vmatprep.subr.mxu0 0.0
    %1466 = vmatpush1.msra.mxu0 0.0
    %1467 = vmatprep.subr.mxu0 0.0
    %1468 = vmatpush1.msra.mxu0 0.0
    %1469 = vmatprep.subr.mxu0 0.0
    %1470 = vmatpush1.msra.mxu0 0.0
    %1471 = vmatprep.subr.mxu0 0.0
    %1472 = vmatpush1.msra.mxu0 0.0
    %1473 = vmatprep.subr.mxu0 0.0
    %1474 = vmatpush1.msra.mxu0 0.0
    %1475 = vmatprep.subr.mxu0 0.0
    %1476 = vmatpush1.msra.mxu0 0.0
    %1477 = vmatprep.subr.mxu0 0.0
    %1478 = vmatpush1.msra.mxu0 0.0
    %1479 = vmatprep.subr.mxu0 0.0
    %1480 = vmatpush1.msra.mxu0 0.0
    %1481 = vmatprep.subr.mxu0 0.0
    %1482 = vmatpush1.msra.mxu0 0.0
    %1483 = vmatprep.subr.mxu0 0.0
    %1484 = vmatpush1.msra.mxu0 0.0
    %1485 = vmatprep.subr.mxu0 0.0
    %1486 = vmatpush1.msra.mxu0 0.0
    %1487 = vmatprep.subr.mxu0 0.0
    %1488 = vmatpush1.msra.mxu0 0.0
    %1489 = vmatprep.subr.mxu0 0.0
    %1490 = vmatpush1.msra.mxu0 0.0
    %1491 = vmatprep.subr.mxu0 0.0
    %1492 = vmatpush1.msra.mxu0 0.0
    %1493 = vmatprep.subr.mxu0 0.0
    %1494 = vmatpush1.msra.mxu0 0.0
    %1495 = vmatprep.subr.mxu0 0.0
    %1496 = vmatpush1.msra.mxu0 0.0
    %1497 = vmatprep.subr.mxu0 0.0
    %1498 = vmatpush1.msra.mxu0 0.0
    %1499 = vmatprep.subr.mxu0 0.0
    %1500 = vmatpush1.msra.mxu0 0.0
    %1501 = vmatprep.subr.mxu0 0.0
    %1502 = vmatpush1.msra.mxu0 0.0
    %1503 = vmatprep.subr.mxu0 0.0
    %1504 = vmatpush1.msra.mxu0 0.0
    %1505 = vmatprep.subr.mxu0 0.0
    %1506 = vmatpush1.msra.mxu0 0.0
    %1507 = vmatprep.mubr.f32.mxu0 0.0
    %1508 = vmatmul.mubr.f32.gmra.mrb[0].mxu0 %v1438
    %v1509 = vpop.f32.mrb[0].mxu0
    %v1510 = vadd.f32 %v1435, %v1509
    %v1511 = vpop.f32.mrb[0].mxu0
    %1512 = vmatprep.mubr.f32.mxu0 0.0
    %1513 = vmatmul.mubr.f32.gmra.mrb[0].mxu0 %v1441
    %v1514 = vpop.f32.mrb[0].mxu0
    %v1515 = vadd.f32 %v1435, %v1514
    %v1516 = vpop.f32.mrb[0].mxu0
    %1517 = vdwg.mxu0
    %1518 = vmax.xlane.f32.xlu0 %v1510
    %v1519 = vpop.xlane.xlu0 %1518
    %1520 = vmax.xlane.f32.xlu0 %v1515
    %v1521 = vpop.xlane.xlu0 %1520
    %v1522 = vsub.f32 %v1510, %v1519
    %v1523 = vsub.f32 %v1515, %v1521
    %v1524 = vmul.f32 %v1522, 1.442695
    %v1525 = vpow.pop %v1524
    %v1526 = vmul.f32 %v1523, 1.442695
    %v1527 = vpow.pop %v1526
    %1528 = vadd.xlane.f32.xlu0 %v1525
    %v1529 = vpop.xlane.xlu0 %1528
    %1530 = vadd.xlane.f32.xlu0 %v1527
    %v1531 = vpop.xlane.xlu0 %1530
    %v1532 = vlog2.pop %v1529
    %v1533 = vmul.f32 %v1532, 0.6931472
    %v1534 = vlog2.pop %v1531
    %v1535 = vmul.f32 %v1534, 0.6931472
    %v1536 = vadd.f32 %v1519, %v1533
    %v1537 = vadd.f32 %v1521, %v1535
    %v1538 = vsub.f32 %v1510, %v1536
    %v1539 = vsub.f32 %v1515, %v1537
    %vm1540 = vcmp.ge.f32.partialorder %v1510, %v1519
    %vm1541 = vcmp.ge.f32.partialorder %v1515, %v1521
    %v1542 = vsel %vm1540, %v84, 128
    %v1543 = vsel %vm1541, %v84, 128
    %v1544 = vand.u32 %v1542, 65535
    %v1545 = vshra.s32 %v1542, 16
    %v1546 = vcvt.s32.f32 %v1544
    %v1547 = vcvt.s32.f32 %v1545
    %1548 = vmin.xlane.f32.xlu0 %v1547
    %v1549 = vpop.xlane.xlu0 %1548
    %vm1550 = vcmp.eq.f32.partialorder %v1547, %v1549
    %v1551 = vsel %vm1550, %v1546, inf
    %1552 = vmin.xlane.f32.xlu0 %v1551
    %v1553 = vpop.xlane.xlu0 %1552
    %v1554 = vcvt.f32.s32 %v1553
    %v1555 = vcvt.f32.s32 %v1549
    %v1556 = vshll.u32 %v1555, 16
    %v1557 = vadd.s32 %v1556, %v1554
    %v1558 = vand.u32 %v1543, 65535
    %v1559 = vshra.s32 %v1543, 16
    %v1560 = vcvt.s32.f32 %v1558
    %v1561 = vcvt.s32.f32 %v1559
    %1562 = vmin.xlane.f32.xlu0 %v1561
    %v1563 = vpop.xlane.xlu0 %1562
    %vm1564 = vcmp.eq.f32.partialorder %v1561, %v1563
    %v1565 = vsel %vm1564, %v1560, inf
    %1566 = vmin.xlane.f32.xlu0 %v1565
    %v1567 = vpop.xlane.xlu0 %1566
    %v1568 = vcvt.f32.s32 %v1567
    %v1569 = vcvt.f32.s32 %v1563
    %v1570 = vshll.u32 %v1569, 16
    %v1571 = vadd.s32 %v1570, %v1568
    %1572 = vst.msk [vmem:[#allocation10] sm:$0xff] %vm185, %v1538
    %vm1573 = vcmask 7168
    %1574 = vst.msk [vmem:[%s15] sm:$0xff] %vm1573, %v1557
    %s1575 = scalar_lea.vmem [#allocation10], 8
    %1576 = vst.msk [vmem:[%s1575] sm:$0xff] %vm185, %v1539
    %s1577 = scalar_lea.vmem %s15, 8
    %1578 = vst.msk [vmem:[%s1577] sm:$0xff] %vm1573, %v1571
    // Predicated region
    $region72: #{nao_forward.1} parent=1 // pred_check
      _
    $region73: #{nao_forward.1} parent=1 // pred_check_branch
      %1580 = sbr.rel (0) target = $region75
    $region74: #{nao_forward.1} parent=1 // pred_region
      _
    $region75: #{nao_forward.1} parent=1 // pred_fallthru
      _
    // Predicated region
    $region76: #{nao_forward.1} parent=1 // pred_check
      _
    $region77: #{nao_forward.1} parent=1 // pred_check_branch
      %1582 = sbr.rel (0) target = $region79
    $region78: #{nao_forward.1} parent=1 // pred_region
      %s1584 = ssub.s32 256, 256
      %1585 = vsyncadd [#allocation9], %s1584
      %s1586 = sshll.u32 [#allocation10], 4
      %s1587 = int_to_ptr.vmem [resolvable:$true] %s1586
      %1592 = dma.vmem_to_hbm [thread:$0]  %s1587, 256, %s14, [#allocation9], 128, 128, 8
    $region79: #{nao_forward.1} parent=1 // pred_fallthru
      _
    // Predicated region
    $region80: #{nao_forward.1} parent=1 // pred_check
      _
    $region81: #{nao_forward.1} parent=1 // pred_check_branch
      %1594 = sbr.rel (0) target = $region83
    $region82: #{nao_forward.1} parent=1 // pred_region
      _
    $region83: #{nao_forward.1} parent=1 // pred_fallthru
      _
    // Predicated region
    $region84: #{nao_forward.1} parent=1 // pred_check
      _
    $region85: #{nao_forward.1} parent=1 // pred_check_branch
      %1596 = sbr.rel (0) target = $region87
    $region86: #{nao_forward.1} parent=1 // pred_region
      _
    $region87: #{nao_forward.1} parent=1 // pred_fallthru
      _
    // Predicated region
    $region88: #{nao_forward.1} parent=1 // pred_check
      _
    $region89: #{nao_forward.1} parent=1 // pred_check_branch
      %1598 = sbr.rel (0) target = $region91
    $region90: #{nao_forward.1} parent=1 // pred_region
      %1599 = dma.done [#allocation9], 256
    $region91: #{nao_forward.1} parent=1 // pred_fallthru
      _
    // Predicated region
    $region92: #{nao_forward.1} parent=1 // pred_check
      _
    $region93: #{nao_forward.1} parent=1 // pred_check_branch
      %1601 = sbr.rel (0) target = $region95
    $region94: #{nao_forward.1} parent=1 // pred_region
      _
    $region95: #{nao_forward.1} parent=1 // pred_fallthru
      _
    %1602 = vsyncpa [#allocation8], 1
    %1603 = vsyncpa [#allocation9], 1

</llo_original>
